<compile_context>
chip_gen: v7x
topology: tpu7x:2x2x1
jax: 0.10.0
libtpu: 0.0.40
codegen_flags: <defaults>
</compile_context>

<pallas_src>
import functools

import jax
import jax.numpy as jnp
from jax import lax
from jax.experimental import pallas as pl
from jax.experimental.pallas import tpu as pltpu


# ------------------------------ Pallas kernel -------------------------------

def _transition_up_kernel(x_ref, skip_ref, w_ref, b_ref, o_ref, xp_ref, p_ref, *,
                          hin, win, hs2, ws2, cin, cout, cs,
                          row_offs, col_offs, pad_t, pad_b, pad_l, pad_r):
    # x_ref   : (bt, Hin, Win, Cin)          pre-upsample x (compute dtype, e.g. bf16)
    # skip_ref: (bt*4, Hs2, Ws2, Cs)         skip connection, phase-major, f32
    # w_ref   : (taps*Cin, 4*Cout)           phase-combined conv weights (compute dtype)
    # b_ref   : (1, 4*Cout)                  f32
    # o_ref   : (bt*4, Hs2, Ws2, Ctot_pad)   fused conv || skip output, phase-major, f32
    # xp_ref  : (bt, Hp, Wp, Cin)            VMEM scratch: zero-halo padded x (f32)
    # p_ref   : (bt, Hs2, Ws2, taps*Cin)     VMEM scratch: im2col patches (f32)
    bt = x_ref.shape[0]
    hp = hin + pad_t + pad_b
    wp = win + pad_l + pad_r
    n_co = len(col_offs)

    # 1) Skip pass-through: write the skip channels straight into the fused
    #    output slab (this IS torch.cat([conv_out, skip], dim=1)).  Direct slice
    #    store, issued first so it can interleave with patch build / matmul.
    o_ref[:, :, :, cout:cout + cs] = skip_ref[...]

    # 2) Padded copy of x in VMEM.  Only the halo strips are zeroed (the interior
    #    is fully overwritten below); strips are re-zeroed every grid step so the
    #    kernel stays correct under megacore grid sharding.
    if pad_t:
        xp_ref[:, 0:pad_t, :, :] = jnp.zeros((bt, pad_t, wp, cin), xp_ref.dtype)
    if pad_b:
        xp_ref[:, pad_t + hin:hp, :, :] = jnp.zeros((bt, pad_b, wp, cin), xp_ref.dtype)
    if pad_l:
        xp_ref[:, :, 0:pad_l, :] = jnp.zeros((bt, hp, pad_l, cin), xp_ref.dtype)
    if pad_r:
        xp_ref[:, :, pad_l + win:wp, :] = jnp.zeros((bt, hp, pad_r, cin), xp_ref.dtype)
    xp_ref[:, pad_t:pad_t + hin, pad_l:pad_l + win, :] = x_ref[...].astype(xp_ref.dtype)

    # 3) im2col into a VMEM scratch: one direct slice load + lane-offset store per
    #    tap (no jnp.concatenate relayouts, minimal vreg pressure).
    for ti, ro in enumerate(row_offs):
        for tj, co in enumerate(col_offs):
            t = ti * n_co + tj
            p_ref[:, :, :, t * cin:(t + 1) * cin] = xp_ref[
                :, pad_t + ro:pad_t + ro + hs2, pad_l + co:pad_l + co + ws2, :]

    # 4) ONE MXU matmul covers all 4 phases and the whole batch tile:
    #    (bt*Hs2*Ws2, taps*Cin) x (taps*Cin, 4*Cout), bf16 operands, f32 accum.
    m = bt * hs2 * ws2
    k = p_ref.shape[-1]
    acc = jnp.dot(p_ref[...].reshape(m, k).astype(w_ref.dtype), w_ref[...],
                  preferred_element_type=jnp.float32)
    acc = (acc + b_ref[...]).reshape(bt, hs2, ws2, 4 * cout)   # bias add in f32

    # 5) Per-phase conv slabs: direct slice stores (skip channels already in place).
    for b in range(bt):
        for ph in range(4):
            o_ref[b * 4 + ph, :, :, 0:cout] = acc[
                b, :, :, ph * cout:(ph + 1) * cout].astype(o_ref.dtype)


# -------------------------------- wrapper ------------------------------------

def _pick_batch_tile(n, m_per_batch, bytes_per_batch, *, target_m=256,
                     vmem_budget_bytes=24 << 20):
    """Largest divisor of n whose fused-matmul M stays near the MXU height and
    whose per-step blocks stay well inside a generation-agnostic VMEM budget."""
    bt = 1
    for cand in range(1, n + 1):
        if n % cand:
            continue
        if (cand * m_per_batch <= max(target_m, m_per_batch)
                and cand * bytes_per_batch <= vmem_budget_bytes):
            bt = cand
    return bt


def transition_up(x_nchw, skip_nchw, w_hwio, b, *, compute_dtype=jnp.bfloat16):
    """Fused TransitionUp forward (PyTorch NCHW in / NCHW out).

    x_nchw    : (N, Cin, Hin, Win)  f32
    skip_nchw : (N, Cs,  Hs,  Ws)   f32   (Hs, Ws even; Hs <= 2*Hin, Ws <= 2*Win)
    w_hwio    : (3, 3, Cin, Cout)   f32   conv weight (PyTorch weight.permute(2,3,1,0))
    b         : (Cout,)             f32   conv bias
    returns   : (N, Cout + Cs, Hs, Ws) f32
    compute_dtype: bf16 (default) feeds the MXU natively on v5e/v6e/v7x with f32
                   accumulation; pass jnp.float32 for full-precision operands.
    """
    n, cin, hin, win = x_nchw.shape
    _, cs, hs, ws = skip_nchw.shape
    cout = w_hwio.shape[-1]
    hu, wu = 2 * hin, 2 * win
    assert hs <= hu and ws <= wu, "skip must not be larger than the upsampled map"
    assert hs % 2 == 0 and ws % 2 == 0, "phase decomposition assumes even skip size"
    hs2, ws2 = hs // 2, ws // 2
    r0, c0 = (hu - hs) // 2, (wu - ws) // 2          # static center-crop offsets

    # ---- static polyphase tap geometry --------------------------------------
    # Output pixel (2i+p, 2j+q) of crop(conv3x3(pad1(upsample2(x)))) reads
    # x[i + (p+r0+kh-1)//2, j + (q+c0+kw-1)//2]  (zero outside x).
    row_offs = sorted({(p + r0 + kh - 1) // 2 for p in (0, 1) for kh in range(3)})
    col_offs = sorted({(q + c0 + kw - 1) // 2 for q in (0, 1) for kw in range(3)})
    pad_t = max(0, -row_offs[0])
    pad_b = max(0, hs2 - 1 + row_offs[-1] - (hin - 1))
    pad_l = max(0, -col_offs[0])
    pad_r = max(0, ws2 - 1 + col_offs[-1] - (win - 1))
    hp, wp = hin + pad_t + pad_b, win + pad_l + pad_r
    taps = len(row_offs) * len(col_offs)
    kdim = taps * cin

    # ---- fold the 3x3 weights into per-phase tap weights (tiny, trace-time) --
    w4 = jnp.zeros((len(row_offs), len(col_offs), cin, 4, cout), jnp.float32)
    for p in (0, 1):
        for q in (0, 1):
            ph = 2 * p + q
            for kh in range(3):
                for kw in range(3):
                    ri = row_offs.index((p + r0 + kh - 1) // 2)
                    ci = col_offs.index((q + c0 + kw - 1) // 2)
                    w4 = w4.at[ri, ci, :, ph, :].add(w_hwio[kh, kw])
    w4 = w4.reshape(kdim, 4 * cout).astype(compute_dtype)     # bf16 MXU weights
    b4 = jnp.tile(b, 4).reshape(1, 4 * cout).astype(jnp.float32)

    # ---- lane-dense output channels: pad to a 128 multiple, slice in wrapper --
    ctot = cout + cs
    ctot_pad = ((ctot + 127) // 128) * 128

    # ---- batch tiling: fold batch into the matmul M dimension ---------------
    cbytes = jnp.dtype(compute_dtype).itemsize
    bytes_per_batch = (
        2 * hin * win * cin * cbytes             # x block (double-buffered)
        + 2 * 4 * hs2 * ws2 * cs * 4             # skip block
        + 2 * 4 * hs2 * ws2 * ctot_pad * 4       # out block
        + hp * wp * cin * 4                      # padded-x scratch (f32)
        + hs2 * ws2 * kdim * 4                   # im2col scratch (f32)
    )
    bt = _pick_batch_tile(n, hs2 * ws2, bytes_per_batch)
    n_tiles = n // bt

    # Explicit VMEM budget (raised above the scoped default when needed, capped).
    weight_bytes = 2 * kdim * 4 * cout * cbytes + 2 * 4 * cout * 4
    vmem_limit = int(max(32 << 20,
                         min(2 * (bt * bytes_per_batch + weight_bytes) + (4 << 20),
                             128 << 20)))

    # ---- boundary layout glue (one transpose per tensor, same as NCHW<->NHWC)
    x_nhwc = jnp.transpose(x_nchw, (0, 2, 3, 1)).astype(compute_dtype)
    skip_ph = jnp.transpose(
        skip_nchw.reshape(n, cs, hs2, 2, ws2, 2),
        (0, 3, 5, 2, 4, 1)).reshape(n * 4, hs2, ws2, cs)       # (N*4, Hs2, Ws2, Cs)

    kernel = functools.partial(
        _transition_up_kernel,
        hin=hin, win=win, hs2=hs2, ws2=ws2, cin=cin, cout=cout, cs=cs,
        row_offs=tuple(row_offs), col_offs=tuple(col_offs),
        pad_t=pad_t, pad_b=pad_b, pad_l=pad_l, pad_r=pad_r)

    out_ph = pl.pallas_call(
        kernel,
        out_shape=jax.ShapeDtypeStruct((n * 4, hs2, ws2, ctot_pad), jnp.float32),
        grid_spec=pltpu.PrefetchScalarGridSpec(
            num_scalar_prefetch=0,
            grid=(n_tiles,),
            in_specs=[
                pl.BlockSpec((bt, hin, win, cin), lambda i: (i, 0, 0, 0)),
                pl.BlockSpec((bt * 4, hs2, ws2, cs), lambda i: (i, 0, 0, 0)),
                pl.BlockSpec((kdim, 4 * cout), lambda i: (0, 0)),
                pl.BlockSpec((1, 4 * cout), lambda i: (0, 0)),
            ],
            out_specs=pl.BlockSpec((bt * 4, hs2, ws2, ctot_pad),
                                   lambda i: (i, 0, 0, 0)),
            scratch_shapes=[
                pltpu.VMEM((bt, hp, wp, cin), jnp.float32),       # padded x
                pltpu.VMEM((bt, hs2, ws2, kdim), jnp.float32),    # im2col patches
            ],
        ),
        compiler_params=pltpu.CompilerParams(
            dimension_semantics=("parallel",),        # megacore-shard batch tiles
            vmem_limit_bytes=vmem_limit),
    )(x_nhwc, skip_ph, w4, b4)

    if ctot_pad != ctot:
        out_ph = out_ph[..., :ctot]
    # phase-major -> NCHW: one transpose + free reshapes (replaces the usual
    # NHWC->NCHW boundary transpose, so no extra HBM pass).
    out = jnp.transpose(out_ph.reshape(n, 2, 2, hs2, ws2, ctot),
                        (0, 5, 3, 1, 4, 2)).reshape(n, ctot, hs, ws)
    return out


# ----------------------------- pure-JAX reference ----------------------------

def transition_up_reference(x_nchw, skip_nchw, w_hwio, b):
    hs, ws = skip_nchw.shape[2], skip_nchw.shape[3]
    up = jnp.repeat(jnp.repeat(x_nchw, 2, axis=2), 2, axis=3)
    w_oihw = jnp.transpose(w_hwio, (3, 2, 0, 1))
    out = lax.conv_general_dilated(
        up, w_oihw, window_strides=(1, 1), padding=((1, 1), (1, 1)),
        dimension_numbers=("NCHW", "OIHW", "NCHW"),
        precision=lax.Precision.HIGHEST)
    out = out + b.reshape(1, -1, 1, 1)
    h, w = out.shape[2], out.shape[3]
    y1 = (w - ws) // 2
    y2 = (h - hs) // 2
    out = out[:, :, y2:y2 + hs, y1:y1 + ws]
    return jnp.concatenate([out, skip_nchw], axis=1)


# ----------------------------------- main ------------------------------------

if __name__ == "__main__":
    def run_case(key, n, cin, hin, win, cs, hs, ws, cout, compute_dtype, tol):
        kx, ks, kw, kb = jax.random.split(key, 4)
        x = jax.random.normal(kx, (n, cin, hin, win), jnp.float32)
        skip = jax.random.normal(ks, (n, cs, hs, ws), jnp.float32)
        w = jax.random.normal(kw, (3, 3, cin, cout), jnp.float32) * 0.05
        bias = jax.random.normal(kb, (cout,), jnp.float32) * 0.05

        fn = jax.jit(functools.partial(transition_up, compute_dtype=compute_dtype))
        y = jax.block_until_ready(fn(x, skip, w, bias))
        assert y.shape == (n, cout + cs, hs, ws), y.shape
        assert bool(jnp.all(jnp.isfinite(y)))

        y_ref = jax.block_until_ready(jax.jit(transition_up_reference)(x, skip, w, bias))
        err = float(jnp.max(jnp.abs(y - y_ref)))
        assert err < tol, f"max abs error vs reference: {err} (tol {tol})"

    k1, k2, k3 = jax.random.split(jax.random.PRNGKey(0), 3)

    # crop == 0, Cout+Cs == 128 (already lane-dense), default bf16 MXU path.
    run_case(k1, n=2, cin=32, hin=8, win=8, cs=96, hs=16, ws=16, cout=32,
             compute_dtype=jnp.bfloat16, tol=3e-2)
    # same geometry, f32 operand path (kept loose: TPU f32 matmul default precision).
    run_case(k2, n=2, cin=32, hin=8, win=8, cs=96, hs=16, ws=16, cout=32,
             compute_dtype=jnp.float32, tol=3e-2)
    # center-crop > 0 (18 -> 16) and Cout+Cs = 64 (exercises lane-padding path).
    run_case(k3, n=2, cin=16, hin=9, win=9, cs=48, hs=16, ws=16, cout=16,
             compute_dtype=jnp.bfloat16, tol=3e-2)

    print("KERNEL_OK")
</pallas_src>

<mosaic_0001>
module attributes {stable_mosaic.version = 11 : i64} {
  func.func @_transition_up_kernel(%arg0: i32, %arg1: memref<2x8x8x32xbf16, #tpu.memory_space<vmem>>, %arg2: memref<8x8x8x96xf32, #tpu.memory_space<vmem>>, %arg3: memref<288x128xbf16, #tpu.memory_space<vmem>>, %arg4: memref<1x128xf32, #tpu.memory_space<vmem>>, %arg5: memref<8x8x8x128xf32, #tpu.memory_space<vmem>>, %arg6: memref<2x10x10x32xf32, #tpu.memory_space<vmem>>, %arg7: memref<2x8x8x288xf32, #tpu.memory_space<vmem>>) attributes {dimension_semantics = [#tpu.dimension_semantics<parallel>], iteration_bounds = array<i64: 1>, scalar_prefetch = 0 : i64, scratch_operands = 2 : i64, tpu.core_type = #tpu.core_type<tc>, window_params = [{transform_indices = @transform_0, window_bounds = array<i64: 2, 8, 8, 32>}, {transform_indices = @transform_1, window_bounds = array<i64: 8, 8, 8, 96>}, {pipeline_mode = #tpu.pipeline_mode<synchronous>, transform_indices = @transform_2, window_bounds = array<i64: 288, 128>}, {pipeline_mode = #tpu.pipeline_mode<synchronous>, transform_indices = @transform_3, window_bounds = array<i64: 1, 128>}, {transform_indices = @transform_4, window_bounds = array<i64: 8, 8, 8, 128>}]} {
    %c0 = arith.constant 0 : index
    %c0_0 = arith.constant 0 : index
    %c0_1 = arith.constant 0 : index
    %c0_2 = arith.constant 0 : index
    %0 = vector.load %arg2[%c0, %c0_0, %c0_1, %c0_2] : memref<8x8x8x96xf32, #tpu.memory_space<vmem>>, vector<8x8x8x96xf32>
    %c0_3 = arith.constant 0 : index
    %c0_4 = arith.constant 0 : index
    %c0_5 = arith.constant 0 : index
    %c32 = arith.constant 32 : index
    %1 = vector.load %arg5[%c0_3, %c0_4, %c0_5, %c32] : memref<8x8x8x128xf32, #tpu.memory_space<vmem>>, vector<8x8x8x96xf32>
    tpu.vector_store %arg5[%c0_3, %c0_4, %c0_5, %c32], %0 {strides = array<i32>} : memref<8x8x8x128xf32, #tpu.memory_space<vmem>>, vector<8x8x8x96xf32>,
    %cst = arith.constant 0.000000e+00 : f32
    %2 = vector.broadcast %cst : f32 to vector<2x1x10x32xf32>
    %c0_6 = arith.constant 0 : index
    %c0_7 = arith.constant 0 : index
    %c0_8 = arith.constant 0 : index
    %c0_9 = arith.constant 0 : index
    %3 = vector.load %arg6[%c0_6, %c0_7, %c0_8, %c0_9] : memref<2x10x10x32xf32, #tpu.memory_space<vmem>>, vector<2x1x10x32xf32>
    tpu.vector_store %arg6[%c0_6, %c0_7, %c0_8, %c0_9], %2 {strides = array<i32>} : memref<2x10x10x32xf32, #tpu.memory_space<vmem>>, vector<2x1x10x32xf32>,
    %cst_10 = arith.constant 0.000000e+00 : f32
    %4 = vector.broadcast %cst_10 : f32 to vector<2x1x10x32xf32>
    %c0_11 = arith.constant 0 : index
    %c9 = arith.constant 9 : index
    %c0_12 = arith.constant 0 : index
    %c0_13 = arith.constant 0 : index
    %5 = vector.load %arg6[%c0_11, %c9, %c0_12, %c0_13] : memref<2x10x10x32xf32, #tpu.memory_space<vmem>>, vector<2x1x10x32xf32>
    tpu.vector_store %arg6[%c0_11, %c9, %c0_12, %c0_13], %4 {strides = array<i32>} : memref<2x10x10x32xf32, #tpu.memory_space<vmem>>, vector<2x1x10x32xf32>,
    %cst_14 = arith.constant 0.000000e+00 : f32
    %6 = vector.broadcast %cst_14 : f32 to vector<2x10x1x32xf32>
    %c0_15 = arith.constant 0 : index
    %c0_16 = arith.constant 0 : index
    %c0_17 = arith.constant 0 : index
    %c0_18 = arith.constant 0 : index
    %7 = vector.load %arg6[%c0_15, %c0_16, %c0_17, %c0_18] : memref<2x10x10x32xf32, #tpu.memory_space<vmem>>, vector<2x10x1x32xf32>
    tpu.vector_store %arg6[%c0_15, %c0_16, %c0_17, %c0_18], %6 {strides = array<i32>} : memref<2x10x10x32xf32, #tpu.memory_space<vmem>>, vector<2x10x1x32xf32>,
    %cst_19 = arith.constant 0.000000e+00 : f32
    %8 = vector.broadcast %cst_19 : f32 to vector<2x10x1x32xf32>
    %c0_20 = arith.constant 0 : index
    %c0_21 = arith.constant 0 : index
    %c9_22 = arith.constant 9 : index
    %c0_23 = arith.constant 0 : index
    %9 = vector.load %arg6[%c0_20, %c0_21, %c9_22, %c0_23] : memref<2x10x10x32xf32, #tpu.memory_space<vmem>>, vector<2x10x1x32xf32>
    tpu.vector_store %arg6[%c0_20, %c0_21, %c9_22, %c0_23], %8 {strides = array<i32>} : memref<2x10x10x32xf32, #tpu.memory_space<vmem>>, vector<2x10x1x32xf32>,
    %c0_24 = arith.constant 0 : index
    %c0_25 = arith.constant 0 : index
    %c0_26 = arith.constant 0 : index
    %c0_27 = arith.constant 0 : index
    %10 = vector.load %arg1[%c0_24, %c0_25, %c0_26, %c0_27] : memref<2x8x8x32xbf16, #tpu.memory_space<vmem>>, vector<2x8x8x32xbf16>
    %11 = arith.extf %10 : vector<2x8x8x32xbf16> to vector<2x8x8x32xf32>
    %c0_28 = arith.constant 0 : index
    %c1 = arith.constant 1 : index
    %c1_29 = arith.constant 1 : index
    %c0_30 = arith.constant 0 : index
    %12 = vector.load %arg6[%c0_28, %c1, %c1_29, %c0_30] : memref<2x10x10x32xf32, #tpu.memory_space<vmem>>, vector<2x8x8x32xf32>
    tpu.vector_store %arg6[%c0_28, %c1, %c1_29, %c0_30], %11 {strides = array<i32>} : memref<2x10x10x32xf32, #tpu.memory_space<vmem>>, vector<2x8x8x32xf32>,
    %c0_31 = arith.constant 0 : index
    %c0_32 = arith.constant 0 : index
    %c0_33 = arith.constant 0 : index
    %c0_34 = arith.constant 0 : index
    %13 = vector.load %arg6[%c0_31, %c0_32, %c0_33, %c0_34] : memref<2x10x10x32xf32, #tpu.memory_space<vmem>>, vector<2x8x8x32xf32>
    %c0_35 = arith.constant 0 : index
    %c0_36 = arith.constant 0 : index
    %c0_37 = arith.constant 0 : index
    %c0_38 = arith.constant 0 : index
    %14 = vector.load %arg7[%c0_35, %c0_36, %c0_37, %c0_38] : memref<2x8x8x288xf32, #tpu.memory_space<vmem>>, vector<2x8x8x32xf32>
    tpu.vector_store %arg7[%c0_35, %c0_36, %c0_37, %c0_38], %13 {strides = array<i32>} : memref<2x8x8x288xf32, #tpu.memory_space<vmem>>, vector<2x8x8x32xf32>,
    %c0_39 = arith.constant 0 : index
    %c0_40 = arith.constant 0 : index
    %c1_41 = arith.constant 1 : index
    %c0_42 = arith.constant 0 : index
    %15 = vector.load %arg6[%c0_39, %c0_40, %c1_41, %c0_42] : memref<2x10x10x32xf32, #tpu.memory_space<vmem>>, vector<2x8x8x32xf32>
    %c0_43 = arith.constant 0 : index
    %c0_44 = arith.constant 0 : index
    %c0_45 = arith.constant 0 : index
    %c32_46 = arith.constant 32 : index
    %16 = vector.load %arg7[%c0_43, %c0_44, %c0_45, %c32_46] : memref<2x8x8x288xf32, #tpu.memory_space<vmem>>, vector<2x8x8x32xf32>
    tpu.vector_store %arg7[%c0_43, %c0_44, %c0_45, %c32_46], %15 {strides = array<i32>} : memref<2x8x8x288xf32, #tpu.memory_space<vmem>>, vector<2x8x8x32xf32>,
    %c0_47 = arith.constant 0 : index
    %c0_48 = arith.constant 0 : index
    %c2 = arith.constant 2 : index
    %c0_49 = arith.constant 0 : index
    %17 = vector.load %arg6[%c0_47, %c0_48, %c2, %c0_49] : memref<2x10x10x32xf32, #tpu.memory_space<vmem>>, vector<2x8x8x32xf32>
    %c0_50 = arith.constant 0 : index
    %c0_51 = arith.constant 0 : index
    %c0_52 = arith.constant 0 : index
    %c64 = arith.constant 64 : index
    %18 = vector.load %arg7[%c0_50, %c0_51, %c0_52, %c64] : memref<2x8x8x288xf32, #tpu.memory_space<vmem>>, vector<2x8x8x32xf32>
    tpu.vector_store %arg7[%c0_50, %c0_51, %c0_52, %c64], %17 {strides = array<i32>} : memref<2x8x8x288xf32, #tpu.memory_space<vmem>>, vector<2x8x8x32xf32>,
    %c0_53 = arith.constant 0 : index
    %c1_54 = arith.constant 1 : index
    %c0_55 = arith.constant 0 : index
    %c0_56 = arith.constant 0 : index
    %19 = vector.load %arg6[%c0_53, %c1_54, %c0_55, %c0_56] : memref<2x10x10x32xf32, #tpu.memory_space<vmem>>, vector<2x8x8x32xf32>
    %c0_57 = arith.constant 0 : index
    %c0_58 = arith.constant 0 : index
    %c0_59 = arith.constant 0 : index
    %c96 = arith.constant 96 : index
    %20 = vector.load %arg7[%c0_57, %c0_58, %c0_59, %c96] : memref<2x8x8x288xf32, #tpu.memory_space<vmem>>, vector<2x8x8x32xf32>
    tpu.vector_store %arg7[%c0_57, %c0_58, %c0_59, %c96], %19 {strides = array<i32>} : memref<2x8x8x288xf32, #tpu.memory_space<vmem>>, vector<2x8x8x32xf32>,
    %c0_60 = arith.constant 0 : index
    %c1_61 = arith.constant 1 : index
    %c1_62 = arith.constant 1 : index
    %c0_63 = arith.constant 0 : index
    %21 = vector.load %arg6[%c0_60, %c1_61, %c1_62, %c0_63] : memref<2x10x10x32xf32, #tpu.memory_space<vmem>>, vector<2x8x8x32xf32>
    %c0_64 = arith.constant 0 : index
    %c0_65 = arith.constant 0 : index
    %c0_66 = arith.constant 0 : index
    %c128 = arith.constant 128 : index
    %22 = vector.load %arg7[%c0_64, %c0_65, %c0_66, %c128] : memref<2x8x8x288xf32, #tpu.memory_space<vmem>>, vector<2x8x8x32xf32>
    tpu.vector_store %arg7[%c0_64, %c0_65, %c0_66, %c128], %21 {strides = array<i32>} : memref<2x8x8x288xf32, #tpu.memory_space<vmem>>, vector<2x8x8x32xf32>,
    %c0_67 = arith.constant 0 : index
    %c1_68 = arith.constant 1 : index
    %c2_69 = arith.constant 2 : index
    %c0_70 = arith.constant 0 : index
    %23 = vector.load %arg6[%c0_67, %c1_68, %c2_69, %c0_70] : memref<2x10x10x32xf32, #tpu.memory_space<vmem>>, vector<2x8x8x32xf32>
    %c0_71 = arith.constant 0 : index
    %c0_72 = arith.constant 0 : index
    %c0_73 = arith.constant 0 : index
    %c160 = arith.constant 160 : index
    %24 = vector.load %arg7[%c0_71, %c0_72, %c0_73, %c160] : memref<2x8x8x288xf32, #tpu.memory_space<vmem>>, vector<2x8x8x32xf32>
    tpu.vector_store %arg7[%c0_71, %c0_72, %c0_73, %c160], %23 {strides = array<i32>} : memref<2x8x8x288xf32, #tpu.memory_space<vmem>>, vector<2x8x8x32xf32>,
    %c0_74 = arith.constant 0 : index
    %c2_75 = arith.constant 2 : index
    %c0_76 = arith.constant 0 : index
    %c0_77 = arith.constant 0 : index
    %25 = vector.load %arg6[%c0_74, %c2_75, %c0_76, %c0_77] : memref<2x10x10x32xf32, #tpu.memory_space<vmem>>, vector<2x8x8x32xf32>
    %c0_78 = arith.constant 0 : index
    %c0_79 = arith.constant 0 : index
    %c0_80 = arith.constant 0 : index
    %c192 = arith.constant 192 : index
    %26 = vector.load %arg7[%c0_78, %c0_79, %c0_80, %c192] : memref<2x8x8x288xf32, #tpu.memory_space<vmem>>, vector<2x8x8x32xf32>
    tpu.vector_store %arg7[%c0_78, %c0_79, %c0_80, %c192], %25 {strides = array<i32>} : memref<2x8x8x288xf32, #tpu.memory_space<vmem>>, vector<2x8x8x32xf32>,
    %c0_81 = arith.constant 0 : index
    %c2_82 = arith.constant 2 : index
    %c1_83 = arith.constant 1 : index
    %c0_84 = arith.constant 0 : index
    %27 = vector.load %arg6[%c0_81, %c2_82, %c1_83, %c0_84] : memref<2x10x10x32xf32, #tpu.memory_space<vmem>>, vector<2x8x8x32xf32>
    %c0_85 = arith.constant 0 : index
    %c0_86 = arith.constant 0 : index
    %c0_87 = arith.constant 0 : index
    %c224 = arith.constant 224 : index
    %28 = vector.load %arg7[%c0_85, %c0_86, %c0_87, %c224] : memref<2x8x8x288xf32, #tpu.memory_space<vmem>>, vector<2x8x8x32xf32>
    tpu.vector_store %arg7[%c0_85, %c0_86, %c0_87, %c224], %27 {strides = array<i32>} : memref<2x8x8x288xf32, #tpu.memory_space<vmem>>, vector<2x8x8x32xf32>,
    %c0_88 = arith.constant 0 : index
    %c2_89 = arith.constant 2 : index
    %c2_90 = arith.constant 2 : index
    %c0_91 = arith.constant 0 : index
    %29 = vector.load %arg6[%c0_88, %c2_89, %c2_90, %c0_91] : memref<2x10x10x32xf32, #tpu.memory_space<vmem>>, vector<2x8x8x32xf32>
    %c0_92 = arith.constant 0 : index
    %c0_93 = arith.constant 0 : index
    %c0_94 = arith.constant 0 : index
    %c256 = arith.constant 256 : index
    %30 = vector.load %arg7[%c0_92, %c0_93, %c0_94, %c256] : memref<2x8x8x288xf32, #tpu.memory_space<vmem>>, vector<2x8x8x32xf32>
    tpu.vector_store %arg7[%c0_92, %c0_93, %c0_94, %c256], %29 {strides = array<i32>} : memref<2x8x8x288xf32, #tpu.memory_space<vmem>>, vector<2x8x8x32xf32>,
    %c0_95 = arith.constant 0 : index
    %c0_96 = arith.constant 0 : index
    %c0_97 = arith.constant 0 : index
    %c0_98 = arith.constant 0 : index
    %31 = vector.load %arg7[%c0_95, %c0_96, %c0_97, %c0_98] : memref<2x8x8x288xf32, #tpu.memory_space<vmem>>, vector<2x8x8x288xf32>
    %32 = vector.shape_cast %31 : vector<2x8x8x288xf32> to vector<128x288xf32>
    %33 = arith.truncf %32 : vector<128x288xf32> to vector<128x288xbf16>
    %c0_99 = arith.constant 0 : index
    %c0_100 = arith.constant 0 : index
    %34 = vector.load %arg3[%c0_99, %c0_100] : memref<288x128xbf16, #tpu.memory_space<vmem>>, vector<288x128xbf16>
    %cst_101 = arith.constant dense<0.000000e+00> : vector<128x128xf32>
    %35 = tpu.matmul %33, %34, %cst_101 {dimension_numbers = #tpu.dot_dimension_numbers<[1], [0], [0], [1], [0, 0, 1, 1], [], []>} : vector<128x288xbf16>, vector<288x128xbf16>, vector<128x128xf32> -> vector<128x128xf32>
    %c0_102 = arith.constant 0 : index
    %c0_103 = arith.constant 0 : index
    %36 = vector.load %arg4[%c0_102, %c0_103] : memref<1x128xf32, #tpu.memory_space<vmem>>, vector<1x128xf32>
    %37 = vector.broadcast %36 : vector<1x128xf32> to vector<128x128xf32>
    %38 = arith.addf %35, %37 : vector<128x128xf32>
    %39 = vector.shape_cast %38 : vector<128x128xf32> to vector<2x8x8x128xf32>
    %40 = vector.extract_strided_slice %39 {offsets = [0, 0, 0, 0], sizes = [1, 8, 8, 32], strides = [1, 1, 1, 1]} : vector<2x8x8x128xf32> to vector<1x8x8x32xf32>
    %41 = vector.shape_cast %40 : vector<1x8x8x32xf32> to vector<8x8x32xf32>
    %c0_104 = arith.constant 0 : index
    %c0_105 = arith.constant 0 : index
    %c0_106 = arith.constant 0 : index
    %c0_107 = arith.constant 0 : index
    %42 = vector.load %arg5[%c0_104, %c0_105, %c0_106, %c0_107] : memref<8x8x8x128xf32, #tpu.memory_space<vmem>>, vector<1x8x8x32xf32>
    %43 = vector.shape_cast %42 : vector<1x8x8x32xf32> to vector<8x8x32xf32>
    %44 = vector.shape_cast %41 : vector<8x8x32xf32> to vector<1x8x8x32xf32>
    tpu.vector_store %arg5[%c0_104, %c0_105, %c0_106, %c0_107], %44 {strides = array<i32>} : memref<8x8x8x128xf32, #tpu.memory_space<vmem>>, vector<1x8x8x32xf32>,
    %45 = vector.extract_strided_slice %39 {offsets = [0, 0, 0, 32], sizes = [1, 8, 8, 32], strides = [1, 1, 1, 1]} : vector<2x8x8x128xf32> to vector<1x8x8x32xf32>
    %46 = vector.shape_cast %45 : vector<1x8x8x32xf32> to vector<8x8x32xf32>
    %c1_108 = arith.constant 1 : index
    %c0_109 = arith.constant 0 : index
    %c0_110 = arith.constant 0 : index
    %c0_111 = arith.constant 0 : index
    %47 = vector.load %arg5[%c1_108, %c0_109, %c0_110, %c0_111] : memref<8x8x8x128xf32, #tpu.memory_space<vmem>>, vector<1x8x8x32xf32>
    %48 = vector.shape_cast %47 : vector<1x8x8x32xf32> to vector<8x8x32xf32>
    %49 = vector.shape_cast %46 : vector<8x8x32xf32> to vector<1x8x8x32xf32>
    tpu.vector_store %arg5[%c1_108, %c0_109, %c0_110, %c0_111], %49 {strides = array<i32>} : memref<8x8x8x128xf32, #tpu.memory_space<vmem>>, vector<1x8x8x32xf32>,
    %50 = vector.extract_strided_slice %39 {offsets = [0, 0, 0, 64], sizes = [1, 8, 8, 32], strides = [1, 1, 1, 1]} : vector<2x8x8x128xf32> to vector<1x8x8x32xf32>
    %51 = vector.shape_cast %50 : vector<1x8x8x32xf32> to vector<8x8x32xf32>
    %c2_112 = arith.constant 2 : index
    %c0_113 = arith.constant 0 : index
    %c0_114 = arith.constant 0 : index
    %c0_115 = arith.constant 0 : index
    %52 = vector.load %arg5[%c2_112, %c0_113, %c0_114, %c0_115] : memref<8x8x8x128xf32, #tpu.memory_space<vmem>>, vector<1x8x8x32xf32>
    %53 = vector.shape_cast %52 : vector<1x8x8x32xf32> to vector<8x8x32xf32>
    %54 = vector.shape_cast %51 : vector<8x8x32xf32> to vector<1x8x8x32xf32>
    tpu.vector_store %arg5[%c2_112, %c0_113, %c0_114, %c0_115], %54 {strides = array<i32>} : memref<8x8x8x128xf32, #tpu.memory_space<vmem>>, vector<1x8x8x32xf32>,
    %55 = vector.extract_strided_slice %39 {offsets = [0, 0, 0, 96], sizes = [1, 8, 8, 32], strides = [1, 1, 1, 1]} : vector<2x8x8x128xf32> to vector<1x8x8x32xf32>
    %56 = vector.shape_cast %55 : vector<1x8x8x32xf32> to vector<8x8x32xf32>
    %c3 = arith.constant 3 : index
    %c0_116 = arith.constant 0 : index
    %c0_117 = arith.constant 0 : index
    %c0_118 = arith.constant 0 : index
    %57 = vector.load %arg5[%c3, %c0_116, %c0_117, %c0_118] : memref<8x8x8x128xf32, #tpu.memory_space<vmem>>, vector<1x8x8x32xf32>
    %58 = vector.shape_cast %57 : vector<1x8x8x32xf32> to vector<8x8x32xf32>
    %59 = vector.shape_cast %56 : vector<8x8x32xf32> to vector<1x8x8x32xf32>
    tpu.vector_store %arg5[%c3, %c0_116, %c0_117, %c0_118], %59 {strides = array<i32>} : memref<8x8x8x128xf32, #tpu.memory_space<vmem>>, vector<1x8x8x32xf32>,
    %60 = vector.extract_strided_slice %39 {offsets = [1, 0, 0, 0], sizes = [1, 8, 8, 32], strides = [1, 1, 1, 1]} : vector<2x8x8x128xf32> to vector<1x8x8x32xf32>
    %61 = vector.shape_cast %60 : vector<1x8x8x32xf32> to vector<8x8x32xf32>
    %c4 = arith.constant 4 : index
    %c0_119 = arith.constant 0 : index
    %c0_120 = arith.constant 0 : index
    %c0_121 = arith.constant 0 : index
    %62 = vector.load %arg5[%c4, %c0_119, %c0_120, %c0_121] : memref<8x8x8x128xf32, #tpu.memory_space<vmem>>, vector<1x8x8x32xf32>
    %63 = vector.shape_cast %62 : vector<1x8x8x32xf32> to vector<8x8x32xf32>
    %64 = vector.shape_cast %61 : vector<8x8x32xf32> to vector<1x8x8x32xf32>
    tpu.vector_store %arg5[%c4, %c0_119, %c0_120, %c0_121], %64 {strides = array<i32>} : memref<8x8x8x128xf32, #tpu.memory_space<vmem>>, vector<1x8x8x32xf32>,
    %65 = vector.extract_strided_slice %39 {offsets = [1, 0, 0, 32], sizes = [1, 8, 8, 32], strides = [1, 1, 1, 1]} : vector<2x8x8x128xf32> to vector<1x8x8x32xf32>
    %66 = vector.shape_cast %65 : vector<1x8x8x32xf32> to vector<8x8x32xf32>
    %c5 = arith.constant 5 : index
    %c0_122 = arith.constant 0 : index
    %c0_123 = arith.constant 0 : index
    %c0_124 = arith.constant 0 : index
    %67 = vector.load %arg5[%c5, %c0_122, %c0_123, %c0_124] : memref<8x8x8x128xf32, #tpu.memory_space<vmem>>, vector<1x8x8x32xf32>
    %68 = vector.shape_cast %67 : vector<1x8x8x32xf32> to vector<8x8x32xf32>
    %69 = vector.shape_cast %66 : vector<8x8x32xf32> to vector<1x8x8x32xf32>
    tpu.vector_store %arg5[%c5, %c0_122, %c0_123, %c0_124], %69 {strides = array<i32>} : memref<8x8x8x128xf32, #tpu.memory_space<vmem>>, vector<1x8x8x32xf32>,
    %70 = vector.extract_strided_slice %39 {offsets = [1, 0, 0, 64], sizes = [1, 8, 8, 32], strides = [1, 1, 1, 1]} : vector<2x8x8x128xf32> to vector<1x8x8x32xf32>
    %71 = vector.shape_cast %70 : vector<1x8x8x32xf32> to vector<8x8x32xf32>
    %c6 = arith.constant 6 : index
    %c0_125 = arith.constant 0 : index
    %c0_126 = arith.constant 0 : index
    %c0_127 = arith.constant 0 : index
    %72 = vector.load %arg5[%c6, %c0_125, %c0_126, %c0_127] : memref<8x8x8x128xf32, #tpu.memory_space<vmem>>, vector<1x8x8x32xf32>
    %73 = vector.shape_cast %72 : vector<1x8x8x32xf32> to vector<8x8x32xf32>
    %74 = vector.shape_cast %71 : vector<8x8x32xf32> to vector<1x8x8x32xf32>
    tpu.vector_store %arg5[%c6, %c0_125, %c0_126, %c0_127], %74 {strides = array<i32>} : memref<8x8x8x128xf32, #tpu.memory_space<vmem>>, vector<1x8x8x32xf32>,
    %75 = vector.extract_strided_slice %39 {offsets = [1, 0, 0, 96], sizes = [1, 8, 8, 32], strides = [1, 1, 1, 1]} : vector<2x8x8x128xf32> to vector<1x8x8x32xf32>
    %76 = vector.shape_cast %75 : vector<1x8x8x32xf32> to vector<8x8x32xf32>
    %c7 = arith.constant 7 : index
    %c0_128 = arith.constant 0 : index
    %c0_129 = arith.constant 0 : index
    %c0_130 = arith.constant 0 : index
    %77 = vector.load %arg5[%c7, %c0_128, %c0_129, %c0_130] : memref<8x8x8x128xf32, #tpu.memory_space<vmem>>, vector<1x8x8x32xf32>
    %78 = vector.shape_cast %77 : vector<1x8x8x32xf32> to vector<8x8x32xf32>
    %79 = vector.shape_cast %76 : vector<8x8x32xf32> to vector<1x8x8x32xf32>
    tpu.vector_store %arg5[%c7, %c0_128, %c0_129, %c0_130], %79 {strides = array<i32>} : memref<8x8x8x128xf32, #tpu.memory_space<vmem>>, vector<1x8x8x32xf32>,
    return
  }
  func.func @transform_0(%arg0: i32) -> (i32, i32, i32, i32) {
    %c0_i32 = arith.constant 0 : i32
    %c0_i32_0 = arith.constant 0 : i32
    %c0_i32_1 = arith.constant 0 : i32
    %c0_i32_2 = arith.constant 0 : i32
    return %arg0, %c0_i32, %c0_i32_0, %c0_i32_1 : i32, i32, i32, i32
  }
  func.func @transform_1(%arg0: i32) -> (i32, i32, i32, i32) {
    %c0_i32 = arith.constant 0 : i32
    %c0_i32_0 = arith.constant 0 : i32
    %c0_i32_1 = arith.constant 0 : i32
    %c0_i32_2 = arith.constant 0 : i32
    return %arg0, %c0_i32, %c0_i32_0, %c0_i32_1 : i32, i32, i32, i32
  }
  func.func @transform_2(%arg0: i32) -> (i32, i32) {
    %c0_i32 = arith.constant 0 : i32
    %c0_i32_0 = arith.constant 0 : i32
    %c0_i32_1 = arith.constant 0 : i32
    return %c0_i32, %c0_i32_0 : i32, i32
  }
  func.func @transform_3(%arg0: i32) -> (i32, i32) {
    %c0_i32 = arith.constant 0 : i32
    %c0_i32_0 = arith.constant 0 : i32
    %c0_i32_1 = arith.constant 0 : i32
    return %c0_i32, %c0_i32_0 : i32, i32
  }
  func.func @transform_4(%arg0: i32) -> (i32, i32, i32, i32) {
    %c0_i32 = arith.constant 0 : i32
    %c0_i32_0 = arith.constant 0 : i32
    %c0_i32_1 = arith.constant 0 : i32
    %c0_i32_2 = arith.constant 0 : i32
    return %arg0, %c0_i32, %c0_i32_0, %c0_i32_1 : i32, i32, i32, i32
  }
}

</mosaic_0001>

<llo_original>
// kernel: tile.8
$region0: #{tile.8}
  #allocation0 [shape = 's32[1]{0}', space=sflag, size = 0x4, scoped, tag = 'scoped memory for tile.8']
  %s0 = inlined_call_operand.vmem [shape: f32[32], index: 0, kind: input, shape index: {}]
  %s1 = inlined_call_operand.vmem [shape: f32[4,32], index: 1, kind: output, shape index: {}]
  // Predicated region
  $region2: #{tile.8} parent=0 // pred_check
    _
  $region3: #{tile.8} parent=0 // pred_check_branch
    %3 = sbr.rel (0) target = $region5
  $region4: #{tile.8} parent=0 // pred_region
    _
  $region5: #{tile.8} parent=0 // pred_fallthru
    _
  %v4 = vld [vmem:[%s0] ss:$0 sm:$0xff]
  %5 = vst [vmem:[%s1] sm:$0xf] %v4

// kernel: tile.9
$region0: #{tile.9}
  %s0 = inlined_call_operand.vmem [shape: f32[4,32], index: 0, kind: input, shape index: {}]
  %s1 = inlined_call_operand.vmem [shape: f32[1,128], index: 1, kind: output, shape index: {}]
  $region1: #{tile.9} parent=0
    #allocation0 [shape = 'u8[4096]{0}', space=vmem, size = 0x1000, scoped, tag = 'scoped mem for output reshape']
    #allocation1 [shape = 'u8[4096]{0}', space=vmem, size = 0x1000, scoped, tag = 'scoped mem for input reshape']
    %s3 = sshllo.u32 0, 4
    %v4 = vld [vmem:[%s0] sm:%s3]
    %5 = vst [vmem:[#allocation1] sm:%s3] %v4
    %v6 = vld [vmem:[#allocation1] sm:$0x1]
    %vm7 = vcmask 261120
    %8 = vst.msk [vmem:[#allocation0] sm:$0x1] %vm7, %v6
    %s9 = scalar_lea.vmem [#allocation1], 3
    %v10 = vld [vmem:[%s9] sm:$0x1]
    %11 = vrot.lane.b32.xlu0 %v10, 96
    %v12 = vpop.permute.xlu0 %11
    %vm13 = vcmask 1048320
    %14 = vst.msk [vmem:[#allocation0] sm:$0x1] %vm13, %v12
    %s15 = scalar_lea.vmem [#allocation1], 2
    %v16 = vld [vmem:[%s15] sm:$0x1]
    %17 = vrot.lane.b32.xlu0 %v16, 64
    %v18 = vpop.permute.xlu0 %17
    %vm19 = vcmask 785920
    %20 = vst.msk [vmem:[#allocation0] sm:$0x1] %vm19, %v18
    %s21 = scalar_lea.vmem [#allocation1], 1
    %v22 = vld [vmem:[%s21] sm:$0x1]
    %23 = vrot.lane.b32.xlu0 %v22, 32
    %v24 = vpop.permute.xlu0 %23
    %vm25 = vcmask 523520
    %26 = vst.msk [vmem:[#allocation0] sm:$0x1] %vm25, %v24
    %s28 = sshllo.u32 0, 1
    %v30 = vld [vmem:[#allocation0] sm:%s28]
    %s31 = sshllo.u32 0, 1
    %32 = vst [vmem:[%s1] sm:%s31] %v30

// kernel: transition_up.1
$region0: #{transition_up.1}
  #allocation0 [shape = 'u32[]', space=smem, size = 0x4, offset = 0x4, fixed_abs, tag = 'smem constant byte address 0x4 - core index']
  #allocation1 [shape = 'u32[144,128]{1,0:T(1,128)}', space=vmem, size = 0x12000, scoped, tag = 'internal scratch']
  #allocation2 [shape = 'f32[2,10,10,32]{3,2,1,0:T(8,128)}', space=vmem, size = 0x28000, scoped, tag = 'scratch operand']
  #allocation3 [shape = 'f32[2,8,8,288]{3,2,1,0:T(8,128)}', space=vmem, size = 0x30000, scoped, tag = 'scratch operand']
  %s0 = inlined_call_operand.vmem [shape: bf16[2,8,8,32], index: 0, kind: input, shape index: {}]
  %s1 = inlined_call_operand.vmem [shape: f32[8,8,8,96], index: 1, kind: input, shape index: {}]
  %s2 = inlined_call_operand.vmem [shape: bf16[288,128], index: 2, kind: input, shape index: {}]
  %s3 = inlined_call_operand.vmem [shape: f32[1,128], index: 3, kind: input, shape index: {}]
  %s4 = inlined_call_operand.vmem [shape: f32[8,8,8,128], index: 4, kind: output, shape index: {}]
  %s5 = sld [smem:[#allocation0]]
  $region26: #{transition_up.1} parent=0
    _
  %s7 = ssub.s32 1, %s5
  %s8 = scalar_select 0, %s7, %s5
  // Predicated region
  $region2: #{transition_up.1} parent=0 // pred_check
    _
  $region3: #{transition_up.1} parent=0 // pred_check_branch
    %10 = sbr.rel (0) target = $region5
  $region4: #{transition_up.1} parent=0 // pred_region
    _
  $region5: #{transition_up.1} parent=0 // pred_fallthru
    _
  // Predicated region
  $region6: #{transition_up.1} parent=0 // pred_check
    _
  $region7: #{transition_up.1} parent=0 // pred_check_branch
    %12 = sbr.rel (0) target = $region9
  $region8: #{transition_up.1} parent=0 // pred_region
    _
  $region9: #{transition_up.1} parent=0 // pred_fallthru
    _
  // Predicated region
  $region10: #{transition_up.1} parent=0 // pred_check
    _
  $region11: #{transition_up.1} parent=0 // pred_check_branch
    %14 = sbr.rel (0) target = $region13
  $region12: #{transition_up.1} parent=0 // pred_region
    _
  $region13: #{transition_up.1} parent=0 // pred_fallthru
    _
  // Predicated region
  $region14: #{transition_up.1} parent=0 // pred_check
    _
  $region15: #{transition_up.1} parent=0 // pred_check_branch
    %16 = sbr.rel (0) target = $region17
  $region16: #{transition_up.1} parent=0 // pred_region
    _
  $region17: #{transition_up.1} parent=0 // pred_fallthru
    _
  %v18 = vld [vmem:[%s1] sm:$0xff]
  %v19 = vld [vmem:[%s1 + $0x8] sm:$0xff]
  %v20 = vld [vmem:[%s1 + $0x10] sm:$0xff]
  %v21 = vld [vmem:[%s1 + $0x18] sm:$0xff]
  %v22 = vld [vmem:[%s1 + $0x20] sm:$0xff]
  %v23 = vld [vmem:[%s1 + $0x28] sm:$0xff]
  %v24 = vld [vmem:[%s1 + $0x30] sm:$0xff]
  %v25 = vld [vmem:[%s1 + $0x38] sm:$0xff]
  %v26 = vld [vmem:[%s1 + $0x40] sm:$0xff]
  %v27 = vld [vmem:[%s1 + $0x48] sm:$0xff]
  %v28 = vld [vmem:[%s1 + $0x50] sm:$0xff]
  %v29 = vld [vmem:[%s1 + $0x58] sm:$0xff]
  %v30 = vld [vmem:[%s1 + $0x60] sm:$0xff]
  %v31 = vld [vmem:[%s1 + $0x68] sm:$0xff]
  %v32 = vld [vmem:[%s1 + $0x70] sm:$0xff]
  %v33 = vld [vmem:[%s1 + $0x78] sm:$0xff]
  %v34 = vld [vmem:[%s1 + $0x80] sm:$0xff]
  %v35 = vld [vmem:[%s1 + $0x88] sm:$0xff]
  %v36 = vld [vmem:[%s1 + $0x90] sm:$0xff]
  %v37 = vld [vmem:[%s1 + $0x98] sm:$0xff]
  %v38 = vld [vmem:[%s1 + $0xa0] sm:$0xff]
  %v39 = vld [vmem:[%s1 + $0xa8] sm:$0xff]
  %v40 = vld [vmem:[%s1 + $0xb0] sm:$0xff]
  %v41 = vld [vmem:[%s1 + $0xb8] sm:$0xff]
  %v42 = vld [vmem:[%s1 + $0xc0] sm:$0xff]
  %v43 = vld [vmem:[%s1 + $0xc8] sm:$0xff]
  %v44 = vld [vmem:[%s1 + $0xd0] sm:$0xff]
  %v45 = vld [vmem:[%s1 + $0xd8] sm:$0xff]
  %v46 = vld [vmem:[%s1 + $0xe0] sm:$0xff]
  %v47 = vld [vmem:[%s1 + $0xe8] sm:$0xff]
  %v48 = vld [vmem:[%s1 + $0xf0] sm:$0xff]
  %v49 = vld [vmem:[%s1 + $0xf8] sm:$0xff]
  %v50 = vld [vmem:[%s1 + $0x100] sm:$0xff]
  %v51 = vld [vmem:[%s1 + $0x108] sm:$0xff]
  %v52 = vld [vmem:[%s1 + $0x110] sm:$0xff]
  %v53 = vld [vmem:[%s1 + $0x118] sm:$0xff]
  %v54 = vld [vmem:[%s1 + $0x120] sm:$0xff]
  %v55 = vld [vmem:[%s1 + $0x128] sm:$0xff]
  %v56 = vld [vmem:[%s1 + $0x130] sm:$0xff]
  %v57 = vld [vmem:[%s1 + $0x138] sm:$0xff]
  %v58 = vld [vmem:[%s1 + $0x140] sm:$0xff]
  %v59 = vld [vmem:[%s1 + $0x148] sm:$0xff]
  %v60 = vld [vmem:[%s1 + $0x150] sm:$0xff]
  %v61 = vld [vmem:[%s1 + $0x158] sm:$0xff]
  %v62 = vld [vmem:[%s1 + $0x160] sm:$0xff]
  %v63 = vld [vmem:[%s1 + $0x168] sm:$0xff]
  %v64 = vld [vmem:[%s1 + $0x170] sm:$0xff]
  %v65 = vld [vmem:[%s1 + $0x178] sm:$0xff]
  %v66 = vld [vmem:[%s1 + $0x180] sm:$0xff]
  %v67 = vld [vmem:[%s1 + $0x188] sm:$0xff]
  %v68 = vld [vmem:[%s1 + $0x190] sm:$0xff]
  %v69 = vld [vmem:[%s1 + $0x198] sm:$0xff]
  %v70 = vld [vmem:[%s1 + $0x1a0] sm:$0xff]
  %v71 = vld [vmem:[%s1 + $0x1a8] sm:$0xff]
  %v72 = vld [vmem:[%s1 + $0x1b0] sm:$0xff]
  %v73 = vld [vmem:[%s1 + $0x1b8] sm:$0xff]
  %v74 = vld [vmem:[%s1 + $0x1c0] sm:$0xff]
  %v75 = vld [vmem:[%s1 + $0x1c8] sm:$0xff]
  %v76 = vld [vmem:[%s1 + $0x1d0] sm:$0xff]
  %v77 = vld [vmem:[%s1 + $0x1d8] sm:$0xff]
  %v78 = vld [vmem:[%s1 + $0x1e0] sm:$0xff]
  %v79 = vld [vmem:[%s1 + $0x1e8] sm:$0xff]
  %v80 = vld [vmem:[%s1 + $0x1f0] sm:$0xff]
  %v81 = vld [vmem:[%s1 + $0x1f8] sm:$0xff]
  %146 = vrot.lane.b32.xlu0 %v18, 32
  %v147 = vpop.permute.xlu0 %146
  %148 = vrot.lane.b32.xlu0 %v19, 32
  %v149 = vpop.permute.xlu0 %148
  %150 = vrot.lane.b32.xlu0 %v20, 32
  %v151 = vpop.permute.xlu0 %150
  %152 = vrot.lane.b32.xlu0 %v21, 32
  %v153 = vpop.permute.xlu0 %152
  %154 = vrot.lane.b32.xlu0 %v22, 32
  %v155 = vpop.permute.xlu0 %154
  %156 = vrot.lane.b32.xlu0 %v23, 32
  %v157 = vpop.permute.xlu0 %156
  %158 = vrot.lane.b32.xlu0 %v24, 32
  %v159 = vpop.permute.xlu0 %158
  %160 = vrot.lane.b32.xlu0 %v25, 32
  %v161 = vpop.permute.xlu0 %160
  %162 = vrot.lane.b32.xlu0 %v26, 32
  %v163 = vpop.permute.xlu0 %162
  %164 = vrot.lane.b32.xlu0 %v27, 32
  %v165 = vpop.permute.xlu0 %164
  %166 = vrot.lane.b32.xlu0 %v28, 32
  %v167 = vpop.permute.xlu0 %166
  %168 = vrot.lane.b32.xlu0 %v29, 32
  %v169 = vpop.permute.xlu0 %168
  %170 = vrot.lane.b32.xlu0 %v30, 32
  %v171 = vpop.permute.xlu0 %170
  %172 = vrot.lane.b32.xlu0 %v31, 32
  %v173 = vpop.permute.xlu0 %172
  %174 = vrot.lane.b32.xlu0 %v32, 32
  %v175 = vpop.permute.xlu0 %174
  %176 = vrot.lane.b32.xlu0 %v33, 32
  %v177 = vpop.permute.xlu0 %176
  %178 = vrot.lane.b32.xlu0 %v34, 32
  %v179 = vpop.permute.xlu0 %178
  %180 = vrot.lane.b32.xlu0 %v35, 32
  %v181 = vpop.permute.xlu0 %180
  %182 = vrot.lane.b32.xlu0 %v36, 32
  %v183 = vpop.permute.xlu0 %182
  %184 = vrot.lane.b32.xlu0 %v37, 32
  %v185 = vpop.permute.xlu0 %184
  %186 = vrot.lane.b32.xlu0 %v38, 32
  %v187 = vpop.permute.xlu0 %186
  %188 = vrot.lane.b32.xlu0 %v39, 32
  %v189 = vpop.permute.xlu0 %188
  %190 = vrot.lane.b32.xlu0 %v40, 32
  %v191 = vpop.permute.xlu0 %190
  %192 = vrot.lane.b32.xlu0 %v41, 32
  %v193 = vpop.permute.xlu0 %192
  %194 = vrot.lane.b32.xlu0 %v42, 32
  %v195 = vpop.permute.xlu0 %194
  %196 = vrot.lane.b32.xlu0 %v43, 32
  %v197 = vpop.permute.xlu0 %196
  %198 = vrot.lane.b32.xlu0 %v44, 32
  %v199 = vpop.permute.xlu0 %198
  %200 = vrot.lane.b32.xlu0 %v45, 32
  %v201 = vpop.permute.xlu0 %200
  %202 = vrot.lane.b32.xlu0 %v46, 32
  %v203 = vpop.permute.xlu0 %202
  %204 = vrot.lane.b32.xlu0 %v47, 32
  %v205 = vpop.permute.xlu0 %204
  %206 = vrot.lane.b32.xlu0 %v48, 32
  %v207 = vpop.permute.xlu0 %206
  %208 = vrot.lane.b32.xlu0 %v49, 32
  %v209 = vpop.permute.xlu0 %208
  %210 = vrot.lane.b32.xlu0 %v50, 32
  %v211 = vpop.permute.xlu0 %210
  %212 = vrot.lane.b32.xlu0 %v51, 32
  %v213 = vpop.permute.xlu0 %212
  %214 = vrot.lane.b32.xlu0 %v52, 32
  %v215 = vpop.permute.xlu0 %214
  %216 = vrot.lane.b32.xlu0 %v53, 32
  %v217 = vpop.permute.xlu0 %216
  %218 = vrot.lane.b32.xlu0 %v54, 32
  %v219 = vpop.permute.xlu0 %218
  %220 = vrot.lane.b32.xlu0 %v55, 32
  %v221 = vpop.permute.xlu0 %220
  %222 = vrot.lane.b32.xlu0 %v56, 32
  %v223 = vpop.permute.xlu0 %222
  %224 = vrot.lane.b32.xlu0 %v57, 32
  %v225 = vpop.permute.xlu0 %224
  %226 = vrot.lane.b32.xlu0 %v58, 32
  %v227 = vpop.permute.xlu0 %226
  %228 = vrot.lane.b32.xlu0 %v59, 32
  %v229 = vpop.permute.xlu0 %228
  %230 = vrot.lane.b32.xlu0 %v60, 32
  %v231 = vpop.permute.xlu0 %230
  %232 = vrot.lane.b32.xlu0 %v61, 32
  %v233 = vpop.permute.xlu0 %232
  %234 = vrot.lane.b32.xlu0 %v62, 32
  %v235 = vpop.permute.xlu0 %234
  %236 = vrot.lane.b32.xlu0 %v63, 32
  %v237 = vpop.permute.xlu0 %236
  %238 = vrot.lane.b32.xlu0 %v64, 32
  %v239 = vpop.permute.xlu0 %238
  %240 = vrot.lane.b32.xlu0 %v65, 32
  %v241 = vpop.permute.xlu0 %240
  %242 = vrot.lane.b32.xlu0 %v66, 32
  %v243 = vpop.permute.xlu0 %242
  %244 = vrot.lane.b32.xlu0 %v67, 32
  %v245 = vpop.permute.xlu0 %244
  %246 = vrot.lane.b32.xlu0 %v68, 32
  %v247 = vpop.permute.xlu0 %246
  %248 = vrot.lane.b32.xlu0 %v69, 32
  %v249 = vpop.permute.xlu0 %248
  %250 = vrot.lane.b32.xlu0 %v70, 32
  %v251 = vpop.permute.xlu0 %250
  %252 = vrot.lane.b32.xlu0 %v71, 32
  %v253 = vpop.permute.xlu0 %252
  %254 = vrot.lane.b32.xlu0 %v72, 32
  %v255 = vpop.permute.xlu0 %254
  %256 = vrot.lane.b32.xlu0 %v73, 32
  %v257 = vpop.permute.xlu0 %256
  %258 = vrot.lane.b32.xlu0 %v74, 32
  %v259 = vpop.permute.xlu0 %258
  %260 = vrot.lane.b32.xlu0 %v75, 32
  %v261 = vpop.permute.xlu0 %260
  %262 = vrot.lane.b32.xlu0 %v76, 32
  %v263 = vpop.permute.xlu0 %262
  %264 = vrot.lane.b32.xlu0 %v77, 32
  %v265 = vpop.permute.xlu0 %264
  %266 = vrot.lane.b32.xlu0 %v78, 32
  %v267 = vpop.permute.xlu0 %266
  %268 = vrot.lane.b32.xlu0 %v79, 32
  %v269 = vpop.permute.xlu0 %268
  %270 = vrot.lane.b32.xlu0 %v80, 32
  %v271 = vpop.permute.xlu0 %270
  %272 = vrot.lane.b32.xlu0 %v81, 32
  %v273 = vpop.permute.xlu0 %272
  %vm338 = vcmask 1047808
  %339 = vst.msk [vmem:[%s4] sm:$0xff] %vm338, %v147
  %340 = vst.msk [vmem:[%s4 + $0x8] sm:$0xff] %vm338, %v149
  %341 = vst.msk [vmem:[%s4 + $0x10] sm:$0xff] %vm338, %v151
  %342 = vst.msk [vmem:[%s4 + $0x18] sm:$0xff] %vm338, %v153
  %343 = vst.msk [vmem:[%s4 + $0x20] sm:$0xff] %vm338, %v155
  %344 = vst.msk [vmem:[%s4 + $0x28] sm:$0xff] %vm338, %v157
  %345 = vst.msk [vmem:[%s4 + $0x30] sm:$0xff] %vm338, %v159
  %346 = vst.msk [vmem:[%s4 + $0x38] sm:$0xff] %vm338, %v161
  %347 = vst.msk [vmem:[%s4 + $0x40] sm:$0xff] %vm338, %v163
  %348 = vst.msk [vmem:[%s4 + $0x48] sm:$0xff] %vm338, %v165
  %349 = vst.msk [vmem:[%s4 + $0x50] sm:$0xff] %vm338, %v167
  %350 = vst.msk [vmem:[%s4 + $0x58] sm:$0xff] %vm338, %v169
  %351 = vst.msk [vmem:[%s4 + $0x60] sm:$0xff] %vm338, %v171
  %352 = vst.msk [vmem:[%s4 + $0x68] sm:$0xff] %vm338, %v173
  %353 = vst.msk [vmem:[%s4 + $0x70] sm:$0xff] %vm338, %v175
  %354 = vst.msk [vmem:[%s4 + $0x78] sm:$0xff] %vm338, %v177
  %355 = vst.msk [vmem:[%s4 + $0x80] sm:$0xff] %vm338, %v179
  %356 = vst.msk [vmem:[%s4 + $0x88] sm:$0xff] %vm338, %v181
  %357 = vst.msk [vmem:[%s4 + $0x90] sm:$0xff] %vm338, %v183
  %358 = vst.msk [vmem:[%s4 + $0x98] sm:$0xff] %vm338, %v185
  %359 = vst.msk [vmem:[%s4 + $0xa0] sm:$0xff] %vm338, %v187
  %360 = vst.msk [vmem:[%s4 + $0xa8] sm:$0xff] %vm338, %v189
  %361 = vst.msk [vmem:[%s4 + $0xb0] sm:$0xff] %vm338, %v191
  %362 = vst.msk [vmem:[%s4 + $0xb8] sm:$0xff] %vm338, %v193
  %363 = vst.msk [vmem:[%s4 + $0xc0] sm:$0xff] %vm338, %v195
  %364 = vst.msk [vmem:[%s4 + $0xc8] sm:$0xff] %vm338, %v197
  %365 = vst.msk [vmem:[%s4 + $0xd0] sm:$0xff] %vm338, %v199
  %366 = vst.msk [vmem:[%s4 + $0xd8] sm:$0xff] %vm338, %v201
  %367 = vst.msk [vmem:[%s4 + $0xe0] sm:$0xff] %vm338, %v203
  %368 = vst.msk [vmem:[%s4 + $0xe8] sm:$0xff] %vm338, %v205
  %369 = vst.msk [vmem:[%s4 + $0xf0] sm:$0xff] %vm338, %v207
  %370 = vst.msk [vmem:[%s4 + $0xf8] sm:$0xff] %vm338, %v209
  %371 = vst.msk [vmem:[%s4 + $0x100] sm:$0xff] %vm338, %v211
  %372 = vst.msk [vmem:[%s4 + $0x108] sm:$0xff] %vm338, %v213
  %373 = vst.msk [vmem:[%s4 + $0x110] sm:$0xff] %vm338, %v215
  %374 = vst.msk [vmem:[%s4 + $0x118] sm:$0xff] %vm338, %v217
  %375 = vst.msk [vmem:[%s4 + $0x120] sm:$0xff] %vm338, %v219
  %376 = vst.msk [vmem:[%s4 + $0x128] sm:$0xff] %vm338, %v221
  %377 = vst.msk [vmem:[%s4 + $0x130] sm:$0xff] %vm338, %v223
  %378 = vst.msk [vmem:[%s4 + $0x138] sm:$0xff] %vm338, %v225
  %379 = vst.msk [vmem:[%s4 + $0x140] sm:$0xff] %vm338, %v227
  %380 = vst.msk [vmem:[%s4 + $0x148] sm:$0xff] %vm338, %v229
  %381 = vst.msk [vmem:[%s4 + $0x150] sm:$0xff] %vm338, %v231
  %382 = vst.msk [vmem:[%s4 + $0x158] sm:$0xff] %vm338, %v233
  %383 = vst.msk [vmem:[%s4 + $0x160] sm:$0xff] %vm338, %v235
  %384 = vst.msk [vmem:[%s4 + $0x168] sm:$0xff] %vm338, %v237
  %385 = vst.msk [vmem:[%s4 + $0x170] sm:$0xff] %vm338, %v239
  %386 = vst.msk [vmem:[%s4 + $0x178] sm:$0xff] %vm338, %v241
  %387 = vst.msk [vmem:[%s4 + $0x180] sm:$0xff] %vm338, %v243
  %388 = vst.msk [vmem:[%s4 + $0x188] sm:$0xff] %vm338, %v245
  %389 = vst.msk [vmem:[%s4 + $0x190] sm:$0xff] %vm338, %v247
  %390 = vst.msk [vmem:[%s4 + $0x198] sm:$0xff] %vm338, %v249
  %391 = vst.msk [vmem:[%s4 + $0x1a0] sm:$0xff] %vm338, %v251
  %392 = vst.msk [vmem:[%s4 + $0x1a8] sm:$0xff] %vm338, %v253
  %393 = vst.msk [vmem:[%s4 + $0x1b0] sm:$0xff] %vm338, %v255
  %394 = vst.msk [vmem:[%s4 + $0x1b8] sm:$0xff] %vm338, %v257
  %395 = vst.msk [vmem:[%s4 + $0x1c0] sm:$0xff] %vm338, %v259
  %396 = vst.msk [vmem:[%s4 + $0x1c8] sm:$0xff] %vm338, %v261
  %397 = vst.msk [vmem:[%s4 + $0x1d0] sm:$0xff] %vm338, %v263
  %398 = vst.msk [vmem:[%s4 + $0x1d8] sm:$0xff] %vm338, %v265
  %399 = vst.msk [vmem:[%s4 + $0x1e0] sm:$0xff] %vm338, %v267
  %400 = vst.msk [vmem:[%s4 + $0x1e8] sm:$0xff] %vm338, %v269
  %401 = vst.msk [vmem:[%s4 + $0x1f0] sm:$0xff] %vm338, %v271
  %402 = vst.msk [vmem:[%s4 + $0x1f8] sm:$0xff] %vm338, %v273
  %vm403 = vcmask 261120
  %404 = vst.msk [vmem:[#allocation2] sm:$0xff] %vm403, 0.0
  %vm405 = vcmask 254976
  %406 = vst.msk [vmem:[#allocation2 + $0x8] sm:$0x3] %vm405, 0.0
  %407 = vst.msk [vmem:[#allocation2 + $0xa0] sm:$0xff] %vm403, 0.0
  %408 = vst.msk [vmem:[#allocation2 + $0xa8] sm:$0x3] %vm405, 0.0
  %s409 = scalar_lea.vmem [#allocation2], 144
  %410 = vst.msk [vmem:[%s409] sm:$0xff] %vm403, 0.0
  %411 = vst.msk [vmem:[%s409 + $0x8] sm:$0x3] %vm405, 0.0
  %412 = vst.msk [vmem:[%s409 + $0xa0] sm:$0xff] %vm403, 0.0
  %413 = vst.msk [vmem:[%s409 + $0xa8] sm:$0x3] %vm405, 0.0
  %vm414 = vcmask 253952
  %415 = vst.msk [vmem:[#allocation2] sm:$0x1] %vm414, 0.0
  %416 = vst.msk [vmem:[#allocation2 + $0x10] sm:$0x1] %vm414, 0.0
  %417 = vst.msk [vmem:[#allocation2 + $0x20] sm:$0x1] %vm414, 0.0
  %418 = vst.msk [vmem:[#allocation2 + $0x30] sm:$0x1] %vm414, 0.0
  %419 = vst.msk [vmem:[#allocation2 + $0x40] sm:$0x1] %vm414, 0.0
  %420 = vst.msk [vmem:[#allocation2 + $0x50] sm:$0x1] %vm414, 0.0
  %421 = vst.msk [vmem:[#allocation2 + $0x60] sm:$0x1] %vm414, 0.0
  %422 = vst.msk [vmem:[#allocation2 + $0x70] sm:$0x1] %vm414, 0.0
  %423 = vst.msk [vmem:[#allocation2 + $0x80] sm:$0x1] %vm414, 0.0
  %424 = vst.msk [vmem:[#allocation2 + $0x90] sm:$0x1] %vm414, 0.0
  %425 = vst.msk [vmem:[#allocation2 + $0xa0] sm:$0x1] %vm414, 0.0
  %426 = vst.msk [vmem:[#allocation2 + $0xb0] sm:$0x1] %vm414, 0.0
  %427 = vst.msk [vmem:[#allocation2 + $0xc0] sm:$0x1] %vm414, 0.0
  %428 = vst.msk [vmem:[#allocation2 + $0xd0] sm:$0x1] %vm414, 0.0
  %429 = vst.msk [vmem:[#allocation2 + $0xe0] sm:$0x1] %vm414, 0.0
  %430 = vst.msk [vmem:[#allocation2 + $0xf0] sm:$0x1] %vm414, 0.0
  %431 = vst.msk [vmem:[#allocation2 + $0x100] sm:$0x1] %vm414, 0.0
  %432 = vst.msk [vmem:[#allocation2 + $0x110] sm:$0x1] %vm414, 0.0
  %433 = vst.msk [vmem:[#allocation2 + $0x120] sm:$0x1] %vm414, 0.0
  %434 = vst.msk [vmem:[#allocation2 + $0x130] sm:$0x1] %vm414, 0.0
  %435 = vst.msk [vmem:[#allocation2 + $0x9] sm:$0x1] %vm414, 0.0
  %436 = vst.msk [vmem:[#allocation2 + $0x19] sm:$0x1] %vm414, 0.0
  %437 = vst.msk [vmem:[#allocation2 + $0x29] sm:$0x1] %vm414, 0.0
  %438 = vst.msk [vmem:[#allocation2 + $0x39] sm:$0x1] %vm414, 0.0
  %439 = vst.msk [vmem:[#allocation2 + $0x49] sm:$0x1] %vm414, 0.0
  %440 = vst.msk [vmem:[#allocation2 + $0x59] sm:$0x1] %vm414, 0.0
  %441 = vst.msk [vmem:[#allocation2 + $0x69] sm:$0x1] %vm414, 0.0
  %442 = vst.msk [vmem:[#allocation2 + $0x79] sm:$0x1] %vm414, 0.0
  %443 = vst.msk [vmem:[#allocation2 + $0x89] sm:$0x1] %vm414, 0.0
  %444 = vst.msk [vmem:[#allocation2 + $0x99] sm:$0x1] %vm414, 0.0
  %445 = vst.msk [vmem:[#allocation2 + $0xa9] sm:$0x1] %vm414, 0.0
  %446 = vst.msk [vmem:[#allocation2 + $0xb9] sm:$0x1] %vm414, 0.0
  %447 = vst.msk [vmem:[#allocation2 + $0xc9] sm:$0x1] %vm414, 0.0
  %448 = vst.msk [vmem:[#allocation2 + $0xd9] sm:$0x1] %vm414, 0.0
  %449 = vst.msk [vmem:[#allocation2 + $0xe9] sm:$0x1] %vm414, 0.0
  %450 = vst.msk [vmem:[#allocation2 + $0xf9] sm:$0x1] %vm414, 0.0
  %451 = vst.msk [vmem:[#allocation2 + $0x109] sm:$0x1] %vm414, 0.0
  %452 = vst.msk [vmem:[#allocation2 + $0x119] sm:$0x1] %vm414, 0.0
  %453 = vst.msk [vmem:[#allocation2 + $0x129] sm:$0x1] %vm414, 0.0
  %454 = vst.msk [vmem:[#allocation2 + $0x139] sm:$0x1] %vm414, 0.0
  %v455 = vld [vmem:[%s0] sm:$0xf]
  %v456 = vld [vmem:[%s0 + $0x4] sm:$0xf]
  %v457 = vld [vmem:[%s0 + $0x8] sm:$0xf]
  %v458 = vld [vmem:[%s0 + $0xc] sm:$0xf]
  %v459 = vld [vmem:[%s0 + $0x10] sm:$0xf]
  %v460 = vld [vmem:[%s0 + $0x14] sm:$0xf]
  %v461 = vld [vmem:[%s0 + $0x18] sm:$0xf]
  %v462 = vld [vmem:[%s0 + $0x1c] sm:$0xf]
  %v463 = vld [vmem:[%s0 + $0x20] sm:$0xf]
  %v464 = vld [vmem:[%s0 + $0x24] sm:$0xf]
  %v465 = vld [vmem:[%s0 + $0x28] sm:$0xf]
  %v466 = vld [vmem:[%s0 + $0x2c] sm:$0xf]
  %v467 = vld [vmem:[%s0 + $0x30] sm:$0xf]
  %v468 = vld [vmem:[%s0 + $0x34] sm:$0xf]
  %v469 = vld [vmem:[%s0 + $0x38] sm:$0xf]
  %v470 = vld [vmem:[%s0 + $0x3c] sm:$0xf]
  %v471 = vunpack.c.l.bf16 %v455
  %v472 = vunpack.c.l.bf16 %v456
  %v473 = vunpack.c.l.bf16 %v457
  %v474 = vunpack.c.l.bf16 %v458
  %v475 = vunpack.c.l.bf16 %v459
  %v476 = vunpack.c.l.bf16 %v460
  %v477 = vunpack.c.l.bf16 %v461
  %v478 = vunpack.c.l.bf16 %v462
  %v479 = vunpack.c.l.bf16 %v463
  %v480 = vunpack.c.l.bf16 %v464
  %v481 = vunpack.c.l.bf16 %v465
  %v482 = vunpack.c.l.bf16 %v466
  %v483 = vunpack.c.l.bf16 %v467
  %v484 = vunpack.c.l.bf16 %v468
  %v485 = vunpack.c.l.bf16 %v469
  %v486 = vunpack.c.l.bf16 %v470
  %s487 = scalar_lea.vmem [#allocation2], 16
  %488 = vst.msk [vmem:[%s487 + $0x1] sm:$0xff] %vm403, %v471
  %489 = vst.msk [vmem:[%s487 + $0x11] sm:$0xff] %vm403, %v472
  %490 = vst.msk [vmem:[%s487 + $0x21] sm:$0xff] %vm403, %v473
  %491 = vst.msk [vmem:[%s487 + $0x31] sm:$0xff] %vm403, %v474
  %492 = vst.msk [vmem:[%s487 + $0x41] sm:$0xff] %vm403, %v475
  %493 = vst.msk [vmem:[%s487 + $0x51] sm:$0xff] %vm403, %v476
  %494 = vst.msk [vmem:[%s487 + $0x61] sm:$0xff] %vm403, %v477
  %495 = vst.msk [vmem:[%s487 + $0x71] sm:$0xff] %vm403, %v478
  %496 = vst.msk [vmem:[%s487 + $0xa1] sm:$0xff] %vm403, %v479
  %497 = vst.msk [vmem:[%s487 + $0xb1] sm:$0xff] %vm403, %v480
  %498 = vst.msk [vmem:[%s487 + $0xc1] sm:$0xff] %vm403, %v481
  %499 = vst.msk [vmem:[%s487 + $0xd1] sm:$0xff] %vm403, %v482
  %500 = vst.msk [vmem:[%s487 + $0xe1] sm:$0xff] %vm403, %v483
  %501 = vst.msk [vmem:[%s487 + $0xf1] sm:$0xff] %vm403, %v484
  %502 = vst.msk [vmem:[%s487 + $0x101] sm:$0xff] %vm403, %v485
  %503 = vst.msk [vmem:[%s487 + $0x111] sm:$0xff] %vm403, %v486
  %v504 = vld [vmem:[#allocation2] sm:$0xff]
  %v505 = vld [vmem:[#allocation2 + $0x10] sm:$0xff]
  %v506 = vld [vmem:[#allocation2 + $0x20] sm:$0xff]
  %v507 = vld [vmem:[#allocation2 + $0x30] sm:$0xff]
  %v508 = vld [vmem:[#allocation2 + $0x40] sm:$0xff]
  %v509 = vld [vmem:[#allocation2 + $0x50] sm:$0xff]
  %v510 = vld [vmem:[#allocation2 + $0x60] sm:$0xff]
  %v511 = vld [vmem:[#allocation2 + $0x70] sm:$0xff]
  %v512 = vld [vmem:[#allocation2 + $0xa0] sm:$0xff]
  %v513 = vld [vmem:[#allocation2 + $0xb0] sm:$0xff]
  %v514 = vld [vmem:[#allocation2 + $0xc0] sm:$0xff]
  %v515 = vld [vmem:[#allocation2 + $0xd0] sm:$0xff]
  %v516 = vld [vmem:[#allocation2 + $0xe0] sm:$0xff]
  %v517 = vld [vmem:[#allocation2 + $0xf0] sm:$0xff]
  %v518 = vld [vmem:[#allocation2 + $0x100] sm:$0xff]
  %v519 = vld [vmem:[#allocation2 + $0x110] sm:$0xff]
  %520 = vst.msk [vmem:[#allocation3] sm:$0xff] %vm403, %v504
  %521 = vst.msk [vmem:[#allocation3 + $0x18] sm:$0xff] %vm403, %v505
  %522 = vst.msk [vmem:[#allocation3 + $0x30] sm:$0xff] %vm403, %v506
  %523 = vst.msk [vmem:[#allocation3 + $0x48] sm:$0xff] %vm403, %v507
  %524 = vst.msk [vmem:[#allocation3 + $0x60] sm:$0xff] %vm403, %v508
  %525 = vst.msk [vmem:[#allocation3 + $0x78] sm:$0xff] %vm403, %v509
  %526 = vst.msk [vmem:[#allocation3 + $0x90] sm:$0xff] %vm403, %v510
  %527 = vst.msk [vmem:[#allocation3 + $0xa8] sm:$0xff] %vm403, %v511
  %528 = vst.msk [vmem:[#allocation3 + $0xc0] sm:$0xff] %vm403, %v512
  %529 = vst.msk [vmem:[#allocation3 + $0xd8] sm:$0xff] %vm403, %v513
  %530 = vst.msk [vmem:[#allocation3 + $0xf0] sm:$0xff] %vm403, %v514
  %531 = vst.msk [vmem:[#allocation3 + $0x108] sm:$0xff] %vm403, %v515
  %532 = vst.msk [vmem:[#allocation3 + $0x120] sm:$0xff] %vm403, %v516
  %533 = vst.msk [vmem:[#allocation3 + $0x138] sm:$0xff] %vm403, %v517
  %534 = vst.msk [vmem:[#allocation3 + $0x150] sm:$0xff] %vm403, %v518
  %535 = vst.msk [vmem:[#allocation3 + $0x168] sm:$0xff] %vm403, %v519
  %v536 = vld [vmem:[#allocation2 + $0x1] sm:$0xff]
  %v537 = vld [vmem:[#allocation2 + $0x11] sm:$0xff]
  %v538 = vld [vmem:[#allocation2 + $0x21] sm:$0xff]
  %v539 = vld [vmem:[#allocation2 + $0x31] sm:$0xff]
  %v540 = vld [vmem:[#allocation2 + $0x41] sm:$0xff]
  %v541 = vld [vmem:[#allocation2 + $0x51] sm:$0xff]
  %v542 = vld [vmem:[#allocation2 + $0x61] sm:$0xff]
  %v543 = vld [vmem:[#allocation2 + $0x71] sm:$0xff]
  %v544 = vld [vmem:[#allocation2 + $0xa1] sm:$0xff]
  %v545 = vld [vmem:[#allocation2 + $0xb1] sm:$0xff]
  %v546 = vld [vmem:[#allocation2 + $0xc1] sm:$0xff]
  %v547 = vld [vmem:[#allocation2 + $0xd1] sm:$0xff]
  %v548 = vld [vmem:[#allocation2 + $0xe1] sm:$0xff]
  %v549 = vld [vmem:[#allocation2 + $0xf1] sm:$0xff]
  %v550 = vld [vmem:[#allocation2 + $0x101] sm:$0xff]
  %v551 = vld [vmem:[#allocation2 + $0x111] sm:$0xff]
  %568 = vrot.lane.b32.xlu0 %v536, 32
  %v569 = vpop.permute.xlu0 %568
  %570 = vrot.lane.b32.xlu0 %v537, 32
  %v571 = vpop.permute.xlu0 %570
  %572 = vrot.lane.b32.xlu0 %v538, 32
  %v573 = vpop.permute.xlu0 %572
  %574 = vrot.lane.b32.xlu0 %v539, 32
  %v575 = vpop.permute.xlu0 %574
  %576 = vrot.lane.b32.xlu0 %v540, 32
  %v577 = vpop.permute.xlu0 %576
  %578 = vrot.lane.b32.xlu0 %v541, 32
  %v579 = vpop.permute.xlu0 %578
  %580 = vrot.lane.b32.xlu0 %v542, 32
  %v581 = vpop.permute.xlu0 %580
  %582 = vrot.lane.b32.xlu0 %v543, 32
  %v583 = vpop.permute.xlu0 %582
  %584 = vrot.lane.b32.xlu0 %v544, 32
  %v585 = vpop.permute.xlu0 %584
  %586 = vrot.lane.b32.xlu0 %v545, 32
  %v587 = vpop.permute.xlu0 %586
  %588 = vrot.lane.b32.xlu0 %v546, 32
  %v589 = vpop.permute.xlu0 %588
  %590 = vrot.lane.b32.xlu0 %v547, 32
  %v591 = vpop.permute.xlu0 %590
  %592 = vrot.lane.b32.xlu0 %v548, 32
  %v593 = vpop.permute.xlu0 %592
  %594 = vrot.lane.b32.xlu0 %v549, 32
  %v595 = vpop.permute.xlu0 %594
  %596 = vrot.lane.b32.xlu0 %v550, 32
  %v597 = vpop.permute.xlu0 %596
  %598 = vrot.lane.b32.xlu0 %v551, 32
  %v599 = vpop.permute.xlu0 %598
  %vm616 = vcmask 523520
  %617 = vst.msk [vmem:[#allocation3] sm:$0xff] %vm616, %v569
  %618 = vst.msk [vmem:[#allocation3 + $0x18] sm:$0xff] %vm616, %v571
  %619 = vst.msk [vmem:[#allocation3 + $0x30] sm:$0xff] %vm616, %v573
  %620 = vst.msk [vmem:[#allocation3 + $0x48] sm:$0xff] %vm616, %v575
  %621 = vst.msk [vmem:[#allocation3 + $0x60] sm:$0xff] %vm616, %v577
  %622 = vst.msk [vmem:[#allocation3 + $0x78] sm:$0xff] %vm616, %v579
  %623 = vst.msk [vmem:[#allocation3 + $0x90] sm:$0xff] %vm616, %v581
  %624 = vst.msk [vmem:[#allocation3 + $0xa8] sm:$0xff] %vm616, %v583
  %625 = vst.msk [vmem:[#allocation3 + $0xc0] sm:$0xff] %vm616, %v585
  %626 = vst.msk [vmem:[#allocation3 + $0xd8] sm:$0xff] %vm616, %v587
  %627 = vst.msk [vmem:[#allocation3 + $0xf0] sm:$0xff] %vm616, %v589
  %628 = vst.msk [vmem:[#allocation3 + $0x108] sm:$0xff] %vm616, %v591
  %629 = vst.msk [vmem:[#allocation3 + $0x120] sm:$0xff] %vm616, %v593
  %630 = vst.msk [vmem:[#allocation3 + $0x138] sm:$0xff] %vm616, %v595
  %631 = vst.msk [vmem:[#allocation3 + $0x150] sm:$0xff] %vm616, %v597
  %632 = vst.msk [vmem:[#allocation3 + $0x168] sm:$0xff] %vm616, %v599
  %v633 = vld [vmem:[#allocation2 + $0x2] sm:$0xff]
  %v634 = vld [vmem:[#allocation2 + $0x12] sm:$0xff]
  %v635 = vld [vmem:[#allocation2 + $0x22] sm:$0xff]
  %v636 = vld [vmem:[#allocation2 + $0x32] sm:$0xff]
  %v637 = vld [vmem:[#allocation2 + $0x42] sm:$0xff]
  %v638 = vld [vmem:[#allocation2 + $0x52] sm:$0xff]
  %v639 = vld [vmem:[#allocation2 + $0x62] sm:$0xff]
  %v640 = vld [vmem:[#allocation2 + $0x72] sm:$0xff]
  %v641 = vld [vmem:[#allocation2 + $0xa2] sm:$0xff]
  %v642 = vld [vmem:[#allocation2 + $0xb2] sm:$0xff]
  %v643 = vld [vmem:[#allocation2 + $0xc2] sm:$0xff]
  %v644 = vld [vmem:[#allocation2 + $0xd2] sm:$0xff]
  %v645 = vld [vmem:[#allocation2 + $0xe2] sm:$0xff]
  %v646 = vld [vmem:[#allocation2 + $0xf2] sm:$0xff]
  %v647 = vld [vmem:[#allocation2 + $0x102] sm:$0xff]
  %v648 = vld [vmem:[#allocation2 + $0x112] sm:$0xff]
  %665 = vrot.lane.b32.xlu0 %v633, 64
  %v666 = vpop.permute.xlu0 %665
  %667 = vrot.lane.b32.xlu0 %v634, 64
  %v668 = vpop.permute.xlu0 %667
  %669 = vrot.lane.b32.xlu0 %v635, 64
  %v670 = vpop.permute.xlu0 %669
  %671 = vrot.lane.b32.xlu0 %v636, 64
  %v672 = vpop.permute.xlu0 %671
  %673 = vrot.lane.b32.xlu0 %v637, 64
  %v674 = vpop.permute.xlu0 %673
  %675 = vrot.lane.b32.xlu0 %v638, 64
  %v676 = vpop.permute.xlu0 %675
  %677 = vrot.lane.b32.xlu0 %v639, 64
  %v678 = vpop.permute.xlu0 %677
  %679 = vrot.lane.b32.xlu0 %v640, 64
  %v680 = vpop.permute.xlu0 %679
  %681 = vrot.lane.b32.xlu0 %v641, 64
  %v682 = vpop.permute.xlu0 %681
  %683 = vrot.lane.b32.xlu0 %v642, 64
  %v684 = vpop.permute.xlu0 %683
  %685 = vrot.lane.b32.xlu0 %v643, 64
  %v686 = vpop.permute.xlu0 %685
  %687 = vrot.lane.b32.xlu0 %v644, 64
  %v688 = vpop.permute.xlu0 %687
  %689 = vrot.lane.b32.xlu0 %v645, 64
  %v690 = vpop.permute.xlu0 %689
  %691 = vrot.lane.b32.xlu0 %v646, 64
  %v692 = vpop.permute.xlu0 %691
  %693 = vrot.lane.b32.xlu0 %v647, 64
  %v694 = vpop.permute.xlu0 %693
  %695 = vrot.lane.b32.xlu0 %v648, 64
  %v696 = vpop.permute.xlu0 %695
  %vm713 = vcmask 785920
  %714 = vst.msk [vmem:[#allocation3] sm:$0xff] %vm713, %v666
  %715 = vst.msk [vmem:[#allocation3 + $0x18] sm:$0xff] %vm713, %v668
  %716 = vst.msk [vmem:[#allocation3 + $0x30] sm:$0xff] %vm713, %v670
  %717 = vst.msk [vmem:[#allocation3 + $0x48] sm:$0xff] %vm713, %v672
  %718 = vst.msk [vmem:[#allocation3 + $0x60] sm:$0xff] %vm713, %v674
  %719 = vst.msk [vmem:[#allocation3 + $0x78] sm:$0xff] %vm713, %v676
  %720 = vst.msk [vmem:[#allocation3 + $0x90] sm:$0xff] %vm713, %v678
  %721 = vst.msk [vmem:[#allocation3 + $0xa8] sm:$0xff] %vm713, %v680
  %722 = vst.msk [vmem:[#allocation3 + $0xc0] sm:$0xff] %vm713, %v682
  %723 = vst.msk [vmem:[#allocation3 + $0xd8] sm:$0xff] %vm713, %v684
  %724 = vst.msk [vmem:[#allocation3 + $0xf0] sm:$0xff] %vm713, %v686
  %725 = vst.msk [vmem:[#allocation3 + $0x108] sm:$0xff] %vm713, %v688
  %726 = vst.msk [vmem:[#allocation3 + $0x120] sm:$0xff] %vm713, %v690
  %727 = vst.msk [vmem:[#allocation3 + $0x138] sm:$0xff] %vm713, %v692
  %728 = vst.msk [vmem:[#allocation3 + $0x150] sm:$0xff] %vm713, %v694
  %729 = vst.msk [vmem:[#allocation3 + $0x168] sm:$0xff] %vm713, %v696
  %v730 = vld [vmem:[%s487] sm:$0xff]
  %v731 = vld [vmem:[%s487 + $0x10] sm:$0xff]
  %v732 = vld [vmem:[%s487 + $0x20] sm:$0xff]
  %v733 = vld [vmem:[%s487 + $0x30] sm:$0xff]
  %v734 = vld [vmem:[%s487 + $0x40] sm:$0xff]
  %v735 = vld [vmem:[%s487 + $0x50] sm:$0xff]
  %v736 = vld [vmem:[%s487 + $0x60] sm:$0xff]
  %v737 = vld [vmem:[%s487 + $0x70] sm:$0xff]
  %v738 = vld [vmem:[%s487 + $0xa0] sm:$0xff]
  %v739 = vld [vmem:[%s487 + $0xb0] sm:$0xff]
  %v740 = vld [vmem:[%s487 + $0xc0] sm:$0xff]
  %v741 = vld [vmem:[%s487 + $0xd0] sm:$0xff]
  %v742 = vld [vmem:[%s487 + $0xe0] sm:$0xff]
  %v743 = vld [vmem:[%s487 + $0xf0] sm:$0xff]
  %v744 = vld [vmem:[%s487 + $0x100] sm:$0xff]
  %v745 = vld [vmem:[%s487 + $0x110] sm:$0xff]
  %762 = vrot.lane.b32.xlu0 %v730, 96
  %v763 = vpop.permute.xlu0 %762
  %764 = vrot.lane.b32.xlu0 %v731, 96
  %v765 = vpop.permute.xlu0 %764
  %766 = vrot.lane.b32.xlu0 %v732, 96
  %v767 = vpop.permute.xlu0 %766
  %768 = vrot.lane.b32.xlu0 %v733, 96
  %v769 = vpop.permute.xlu0 %768
  %770 = vrot.lane.b32.xlu0 %v734, 96
  %v771 = vpop.permute.xlu0 %770
  %772 = vrot.lane.b32.xlu0 %v735, 96
  %v773 = vpop.permute.xlu0 %772
  %774 = vrot.lane.b32.xlu0 %v736, 96
  %v775 = vpop.permute.xlu0 %774
  %776 = vrot.lane.b32.xlu0 %v737, 96
  %v777 = vpop.permute.xlu0 %776
  %778 = vrot.lane.b32.xlu0 %v738, 96
  %v779 = vpop.permute.xlu0 %778
  %780 = vrot.lane.b32.xlu0 %v739, 96
  %v781 = vpop.permute.xlu0 %780
  %782 = vrot.lane.b32.xlu0 %v740, 96
  %v783 = vpop.permute.xlu0 %782
  %784 = vrot.lane.b32.xlu0 %v741, 96
  %v785 = vpop.permute.xlu0 %784
  %786 = vrot.lane.b32.xlu0 %v742, 96
  %v787 = vpop.permute.xlu0 %786
  %788 = vrot.lane.b32.xlu0 %v743, 96
  %v789 = vpop.permute.xlu0 %788
  %790 = vrot.lane.b32.xlu0 %v744, 96
  %v791 = vpop.permute.xlu0 %790
  %792 = vrot.lane.b32.xlu0 %v745, 96
  %v793 = vpop.permute.xlu0 %792
  %vm810 = vcmask 1048320
  %811 = vst.msk [vmem:[#allocation3] sm:$0xff] %vm810, %v763
  %812 = vst.msk [vmem:[#allocation3 + $0x18] sm:$0xff] %vm810, %v765
  %813 = vst.msk [vmem:[#allocation3 + $0x30] sm:$0xff] %vm810, %v767
  %814 = vst.msk [vmem:[#allocation3 + $0x48] sm:$0xff] %vm810, %v769
  %815 = vst.msk [vmem:[#allocation3 + $0x60] sm:$0xff] %vm810, %v771
  %816 = vst.msk [vmem:[#allocation3 + $0x78] sm:$0xff] %vm810, %v773
  %817 = vst.msk [vmem:[#allocation3 + $0x90] sm:$0xff] %vm810, %v775
  %818 = vst.msk [vmem:[#allocation3 + $0xa8] sm:$0xff] %vm810, %v777
  %819 = vst.msk [vmem:[#allocation3 + $0xc0] sm:$0xff] %vm810, %v779
  %820 = vst.msk [vmem:[#allocation3 + $0xd8] sm:$0xff] %vm810, %v781
  %821 = vst.msk [vmem:[#allocation3 + $0xf0] sm:$0xff] %vm810, %v783
  %822 = vst.msk [vmem:[#allocation3 + $0x108] sm:$0xff] %vm810, %v785
  %823 = vst.msk [vmem:[#allocation3 + $0x120] sm:$0xff] %vm810, %v787
  %824 = vst.msk [vmem:[#allocation3 + $0x138] sm:$0xff] %vm810, %v789
  %825 = vst.msk [vmem:[#allocation3 + $0x150] sm:$0xff] %vm810, %v791
  %826 = vst.msk [vmem:[#allocation3 + $0x168] sm:$0xff] %vm810, %v793
  %v827 = vld [vmem:[%s487 + $0x1] sm:$0xff]
  %v828 = vld [vmem:[%s487 + $0x11] sm:$0xff]
  %v829 = vld [vmem:[%s487 + $0x21] sm:$0xff]
  %v830 = vld [vmem:[%s487 + $0x31] sm:$0xff]
  %v831 = vld [vmem:[%s487 + $0x41] sm:$0xff]
  %v832 = vld [vmem:[%s487 + $0x51] sm:$0xff]
  %v833 = vld [vmem:[%s487 + $0x61] sm:$0xff]
  %v834 = vld [vmem:[%s487 + $0x71] sm:$0xff]
  %v835 = vld [vmem:[%s487 + $0xa1] sm:$0xff]
  %v836 = vld [vmem:[%s487 + $0xb1] sm:$0xff]
  %v837 = vld [vmem:[%s487 + $0xc1] sm:$0xff]
  %v838 = vld [vmem:[%s487 + $0xd1] sm:$0xff]
  %v839 = vld [vmem:[%s487 + $0xe1] sm:$0xff]
  %v840 = vld [vmem:[%s487 + $0xf1] sm:$0xff]
  %v841 = vld [vmem:[%s487 + $0x101] sm:$0xff]
  %v842 = vld [vmem:[%s487 + $0x111] sm:$0xff]
  %843 = vst.msk [vmem:[#allocation3 + $0x8] sm:$0xff] %vm403, %v827
  %844 = vst.msk [vmem:[#allocation3 + $0x20] sm:$0xff] %vm403, %v828
  %845 = vst.msk [vmem:[#allocation3 + $0x38] sm:$0xff] %vm403, %v829
  %846 = vst.msk [vmem:[#allocation3 + $0x50] sm:$0xff] %vm403, %v830
  %847 = vst.msk [vmem:[#allocation3 + $0x68] sm:$0xff] %vm403, %v831
  %848 = vst.msk [vmem:[#allocation3 + $0x80] sm:$0xff] %vm403, %v832
  %849 = vst.msk [vmem:[#allocation3 + $0x98] sm:$0xff] %vm403, %v833
  %850 = vst.msk [vmem:[#allocation3 + $0xb0] sm:$0xff] %vm403, %v834
  %851 = vst.msk [vmem:[#allocation3 + $0xc8] sm:$0xff] %vm403, %v835
  %852 = vst.msk [vmem:[#allocation3 + $0xe0] sm:$0xff] %vm403, %v836
  %853 = vst.msk [vmem:[#allocation3 + $0xf8] sm:$0xff] %vm403, %v837
  %854 = vst.msk [vmem:[#allocation3 + $0x110] sm:$0xff] %vm403, %v838
  %855 = vst.msk [vmem:[#allocation3 + $0x128] sm:$0xff] %vm403, %v839
  %856 = vst.msk [vmem:[#allocation3 + $0x140] sm:$0xff] %vm403, %v840
  %857 = vst.msk [vmem:[#allocation3 + $0x158] sm:$0xff] %vm403, %v841
  %858 = vst.msk [vmem:[#allocation3 + $0x170] sm:$0xff] %vm403, %v842
  %v859 = vld [vmem:[%s487 + $0x2] sm:$0xff]
  %v860 = vld [vmem:[%s487 + $0x12] sm:$0xff]
  %v861 = vld [vmem:[%s487 + $0x22] sm:$0xff]
  %v862 = vld [vmem:[%s487 + $0x32] sm:$0xff]
  %v863 = vld [vmem:[%s487 + $0x42] sm:$0xff]
  %v864 = vld [vmem:[%s487 + $0x52] sm:$0xff]
  %v865 = vld [vmem:[%s487 + $0x62] sm:$0xff]
  %v866 = vld [vmem:[%s487 + $0x72] sm:$0xff]
  %v867 = vld [vmem:[%s487 + $0xa2] sm:$0xff]
  %v868 = vld [vmem:[%s487 + $0xb2] sm:$0xff]
  %v869 = vld [vmem:[%s487 + $0xc2] sm:$0xff]
  %v870 = vld [vmem:[%s487 + $0xd2] sm:$0xff]
  %v871 = vld [vmem:[%s487 + $0xe2] sm:$0xff]
  %v872 = vld [vmem:[%s487 + $0xf2] sm:$0xff]
  %v873 = vld [vmem:[%s487 + $0x102] sm:$0xff]
  %v874 = vld [vmem:[%s487 + $0x112] sm:$0xff]
  %891 = vrot.lane.b32.xlu0 %v859, 32
  %v892 = vpop.permute.xlu0 %891
  %893 = vrot.lane.b32.xlu0 %v860, 32
  %v894 = vpop.permute.xlu0 %893
  %895 = vrot.lane.b32.xlu0 %v861, 32
  %v896 = vpop.permute.xlu0 %895
  %897 = vrot.lane.b32.xlu0 %v862, 32
  %v898 = vpop.permute.xlu0 %897
  %899 = vrot.lane.b32.xlu0 %v863, 32
  %v900 = vpop.permute.xlu0 %899
  %901 = vrot.lane.b32.xlu0 %v864, 32
  %v902 = vpop.permute.xlu0 %901
  %903 = vrot.lane.b32.xlu0 %v865, 32
  %v904 = vpop.permute.xlu0 %903
  %905 = vrot.lane.b32.xlu0 %v866, 32
  %v906 = vpop.permute.xlu0 %905
  %907 = vrot.lane.b32.xlu0 %v867, 32
  %v908 = vpop.permute.xlu0 %907
  %909 = vrot.lane.b32.xlu0 %v868, 32
  %v910 = vpop.permute.xlu0 %909
  %911 = vrot.lane.b32.xlu0 %v869, 32
  %v912 = vpop.permute.xlu0 %911
  %913 = vrot.lane.b32.xlu0 %v870, 32
  %v914 = vpop.permute.xlu0 %913
  %915 = vrot.lane.b32.xlu0 %v871, 32
  %v916 = vpop.permute.xlu0 %915
  %917 = vrot.lane.b32.xlu0 %v872, 32
  %v918 = vpop.permute.xlu0 %917
  %919 = vrot.lane.b32.xlu0 %v873, 32
  %v920 = vpop.permute.xlu0 %919
  %921 = vrot.lane.b32.xlu0 %v874, 32
  %v922 = vpop.permute.xlu0 %921
  %939 = vst.msk [vmem:[#allocation3 + $0x8] sm:$0xff] %vm616, %v892
  %940 = vst.msk [vmem:[#allocation3 + $0x20] sm:$0xff] %vm616, %v894
  %941 = vst.msk [vmem:[#allocation3 + $0x38] sm:$0xff] %vm616, %v896
  %942 = vst.msk [vmem:[#allocation3 + $0x50] sm:$0xff] %vm616, %v898
  %943 = vst.msk [vmem:[#allocation3 + $0x68] sm:$0xff] %vm616, %v900
  %944 = vst.msk [vmem:[#allocation3 + $0x80] sm:$0xff] %vm616, %v902
  %945 = vst.msk [vmem:[#allocation3 + $0x98] sm:$0xff] %vm616, %v904
  %946 = vst.msk [vmem:[#allocation3 + $0xb0] sm:$0xff] %vm616, %v906
  %947 = vst.msk [vmem:[#allocation3 + $0xc8] sm:$0xff] %vm616, %v908
  %948 = vst.msk [vmem:[#allocation3 + $0xe0] sm:$0xff] %vm616, %v910
  %949 = vst.msk [vmem:[#allocation3 + $0xf8] sm:$0xff] %vm616, %v912
  %950 = vst.msk [vmem:[#allocation3 + $0x110] sm:$0xff] %vm616, %v914
  %951 = vst.msk [vmem:[#allocation3 + $0x128] sm:$0xff] %vm616, %v916
  %952 = vst.msk [vmem:[#allocation3 + $0x140] sm:$0xff] %vm616, %v918
  %953 = vst.msk [vmem:[#allocation3 + $0x158] sm:$0xff] %vm616, %v920
  %954 = vst.msk [vmem:[#allocation3 + $0x170] sm:$0xff] %vm616, %v922
  %s955 = scalar_lea.vmem [#allocation2], 32
  %v956 = vld [vmem:[%s955] sm:$0xff]
  %v957 = vld [vmem:[%s955 + $0x10] sm:$0xff]
  %v958 = vld [vmem:[%s955 + $0x20] sm:$0xff]
  %v959 = vld [vmem:[%s955 + $0x30] sm:$0xff]
  %v960 = vld [vmem:[%s955 + $0x40] sm:$0xff]
  %v961 = vld [vmem:[%s955 + $0x50] sm:$0xff]
  %v962 = vld [vmem:[%s955 + $0x60] sm:$0xff]
  %v963 = vld [vmem:[%s955 + $0x70] sm:$0xff]
  %v964 = vld [vmem:[%s955 + $0xa0] sm:$0xff]
  %v965 = vld [vmem:[%s955 + $0xb0] sm:$0xff]
  %v966 = vld [vmem:[%s955 + $0xc0] sm:$0xff]
  %v967 = vld [vmem:[%s955 + $0xd0] sm:$0xff]
  %v968 = vld [vmem:[%s955 + $0xe0] sm:$0xff]
  %v969 = vld [vmem:[%s955 + $0xf0] sm:$0xff]
  %v970 = vld [vmem:[%s955 + $0x100] sm:$0xff]
  %v971 = vld [vmem:[%s955 + $0x110] sm:$0xff]
  %988 = vrot.lane.b32.xlu0 %v956, 64
  %v989 = vpop.permute.xlu0 %988
  %990 = vrot.lane.b32.xlu0 %v957, 64
  %v991 = vpop.permute.xlu0 %990
  %992 = vrot.lane.b32.xlu0 %v958, 64
  %v993 = vpop.permute.xlu0 %992
  %994 = vrot.lane.b32.xlu0 %v959, 64
  %v995 = vpop.permute.xlu0 %994
  %996 = vrot.lane.b32.xlu0 %v960, 64
  %v997 = vpop.permute.xlu0 %996
  %998 = vrot.lane.b32.xlu0 %v961, 64
  %v999 = vpop.permute.xlu0 %998
  %1000 = vrot.lane.b32.xlu0 %v962, 64
  %v1001 = vpop.permute.xlu0 %1000
  %1002 = vrot.lane.b32.xlu0 %v963, 64
  %v1003 = vpop.permute.xlu0 %1002
  %1004 = vrot.lane.b32.xlu0 %v964, 64
  %v1005 = vpop.permute.xlu0 %1004
  %1006 = vrot.lane.b32.xlu0 %v965, 64
  %v1007 = vpop.permute.xlu0 %1006
  %1008 = vrot.lane.b32.xlu0 %v966, 64
  %v1009 = vpop.permute.xlu0 %1008
  %1010 = vrot.lane.b32.xlu0 %v967, 64
  %v1011 = vpop.permute.xlu0 %1010
  %1012 = vrot.lane.b32.xlu0 %v968, 64
  %v1013 = vpop.permute.xlu0 %1012
  %1014 = vrot.lane.b32.xlu0 %v969, 64
  %v1015 = vpop.permute.xlu0 %1014
  %1016 = vrot.lane.b32.xlu0 %v970, 64
  %v1017 = vpop.permute.xlu0 %1016
  %1018 = vrot.lane.b32.xlu0 %v971, 64
  %v1019 = vpop.permute.xlu0 %1018
  %1036 = vst.msk [vmem:[#allocation3 + $0x8] sm:$0xff] %vm713, %v989
  %1037 = vst.msk [vmem:[#allocation3 + $0x20] sm:$0xff] %vm713, %v991
  %1038 = vst.msk [vmem:[#allocation3 + $0x38] sm:$0xff] %vm713, %v993
  %1039 = vst.msk [vmem:[#allocation3 + $0x50] sm:$0xff] %vm713, %v995
  %1040 = vst.msk [vmem:[#allocation3 + $0x68] sm:$0xff] %vm713, %v997
  %1041 = vst.msk [vmem:[#allocation3 + $0x80] sm:$0xff] %vm713, %v999
  %1042 = vst.msk [vmem:[#allocation3 + $0x98] sm:$0xff] %vm713, %v1001
  %1043 = vst.msk [vmem:[#allocation3 + $0xb0] sm:$0xff] %vm713, %v1003
  %1044 = vst.msk [vmem:[#allocation3 + $0xc8] sm:$0xff] %vm713, %v1005
  %1045 = vst.msk [vmem:[#allocation3 + $0xe0] sm:$0xff] %vm713, %v1007
  %1046 = vst.msk [vmem:[#allocation3 + $0xf8] sm:$0xff] %vm713, %v1009
  %1047 = vst.msk [vmem:[#allocation3 + $0x110] sm:$0xff] %vm713, %v1011
  %1048 = vst.msk [vmem:[#allocation3 + $0x128] sm:$0xff] %vm713, %v1013
  %1049 = vst.msk [vmem:[#allocation3 + $0x140] sm:$0xff] %vm713, %v1015
  %1050 = vst.msk [vmem:[#allocation3 + $0x158] sm:$0xff] %vm713, %v1017
  %1051 = vst.msk [vmem:[#allocation3 + $0x170] sm:$0xff] %vm713, %v1019
  %v1052 = vld [vmem:[%s955 + $0x1] sm:$0xff]
  %v1053 = vld [vmem:[%s955 + $0x11] sm:$0xff]
  %v1054 = vld [vmem:[%s955 + $0x21] sm:$0xff]
  %v1055 = vld [vmem:[%s955 + $0x31] sm:$0xff]
  %v1056 = vld [vmem:[%s955 + $0x41] sm:$0xff]
  %v1057 = vld [vmem:[%s955 + $0x51] sm:$0xff]
  %v1058 = vld [vmem:[%s955 + $0x61] sm:$0xff]
  %v1059 = vld [vmem:[%s955 + $0x71] sm:$0xff]
  %v1060 = vld [vmem:[%s955 + $0xa1] sm:$0xff]
  %v1061 = vld [vmem:[%s955 + $0xb1] sm:$0xff]
  %v1062 = vld [vmem:[%s955 + $0xc1] sm:$0xff]
  %v1063 = vld [vmem:[%s955 + $0xd1] sm:$0xff]
  %v1064 = vld [vmem:[%s955 + $0xe1] sm:$0xff]
  %v1065 = vld [vmem:[%s955 + $0xf1] sm:$0xff]
  %v1066 = vld [vmem:[%s955 + $0x101] sm:$0xff]
  %v1067 = vld [vmem:[%s955 + $0x111] sm:$0xff]
  %1084 = vrot.lane.b32.xlu0 %v1052, 96
  %v1085 = vpop.permute.xlu0 %1084
  %1086 = vrot.lane.b32.xlu0 %v1053, 96
  %v1087 = vpop.permute.xlu0 %1086
  %1088 = vrot.lane.b32.xlu0 %v1054, 96
  %v1089 = vpop.permute.xlu0 %1088
  %1090 = vrot.lane.b32.xlu0 %v1055, 96
  %v1091 = vpop.permute.xlu0 %1090
  %1092 = vrot.lane.b32.xlu0 %v1056, 96
  %v1093 = vpop.permute.xlu0 %1092
  %1094 = vrot.lane.b32.xlu0 %v1057, 96
  %v1095 = vpop.permute.xlu0 %1094
  %1096 = vrot.lane.b32.xlu0 %v1058, 96
  %v1097 = vpop.permute.xlu0 %1096
  %1098 = vrot.lane.b32.xlu0 %v1059, 96
  %v1099 = vpop.permute.xlu0 %1098
  %1100 = vrot.lane.b32.xlu0 %v1060, 96
  %v1101 = vpop.permute.xlu0 %1100
  %1102 = vrot.lane.b32.xlu0 %v1061, 96
  %v1103 = vpop.permute.xlu0 %1102
  %1104 = vrot.lane.b32.xlu0 %v1062, 96
  %v1105 = vpop.permute.xlu0 %1104
  %1106 = vrot.lane.b32.xlu0 %v1063, 96
  %v1107 = vpop.permute.xlu0 %1106
  %1108 = vrot.lane.b32.xlu0 %v1064, 96
  %v1109 = vpop.permute.xlu0 %1108
  %1110 = vrot.lane.b32.xlu0 %v1065, 96
  %v1111 = vpop.permute.xlu0 %1110
  %1112 = vrot.lane.b32.xlu0 %v1066, 96
  %v1113 = vpop.permute.xlu0 %1112
  %1114 = vrot.lane.b32.xlu0 %v1067, 96
  %v1115 = vpop.permute.xlu0 %1114
  %1132 = vst.msk [vmem:[#allocation3 + $0x8] sm:$0xff] %vm810, %v1085
  %1133 = vst.msk [vmem:[#allocation3 + $0x20] sm:$0xff] %vm810, %v1087
  %1134 = vst.msk [vmem:[#allocation3 + $0x38] sm:$0xff] %vm810, %v1089
  %1135 = vst.msk [vmem:[#allocation3 + $0x50] sm:$0xff] %vm810, %v1091
  %1136 = vst.msk [vmem:[#allocation3 + $0x68] sm:$0xff] %vm810, %v1093
  %1137 = vst.msk [vmem:[#allocation3 + $0x80] sm:$0xff] %vm810, %v1095
  %1138 = vst.msk [vmem:[#allocation3 + $0x98] sm:$0xff] %vm810, %v1097
  %1139 = vst.msk [vmem:[#allocation3 + $0xb0] sm:$0xff] %vm810, %v1099
  %1140 = vst.msk [vmem:[#allocation3 + $0xc8] sm:$0xff] %vm810, %v1101
  %1141 = vst.msk [vmem:[#allocation3 + $0xe0] sm:$0xff] %vm810, %v1103
  %1142 = vst.msk [vmem:[#allocation3 + $0xf8] sm:$0xff] %vm810, %v1105
  %1143 = vst.msk [vmem:[#allocation3 + $0x110] sm:$0xff] %vm810, %v1107
  %1144 = vst.msk [vmem:[#allocation3 + $0x128] sm:$0xff] %vm810, %v1109
  %1145 = vst.msk [vmem:[#allocation3 + $0x140] sm:$0xff] %vm810, %v1111
  %1146 = vst.msk [vmem:[#allocation3 + $0x158] sm:$0xff] %vm810, %v1113
  %1147 = vst.msk [vmem:[#allocation3 + $0x170] sm:$0xff] %vm810, %v1115
  %v1148 = vld [vmem:[%s955 + $0x2] sm:$0xff]
  %v1149 = vld [vmem:[%s955 + $0x12] sm:$0xff]
  %v1150 = vld [vmem:[%s955 + $0x22] sm:$0xff]
  %v1151 = vld [vmem:[%s955 + $0x32] sm:$0xff]
  %v1152 = vld [vmem:[%s955 + $0x42] sm:$0xff]
  %v1153 = vld [vmem:[%s955 + $0x52] sm:$0xff]
  %v1154 = vld [vmem:[%s955 + $0x62] sm:$0xff]
  %v1155 = vld [vmem:[%s955 + $0x72] sm:$0xff]
  %v1156 = vld [vmem:[%s955 + $0xa2] sm:$0xff]
  %v1157 = vld [vmem:[%s955 + $0xb2] sm:$0xff]
  %v1158 = vld [vmem:[%s955 + $0xc2] sm:$0xff]
  %v1159 = vld [vmem:[%s955 + $0xd2] sm:$0xff]
  %v1160 = vld [vmem:[%s955 + $0xe2] sm:$0xff]
  %v1161 = vld [vmem:[%s955 + $0xf2] sm:$0xff]
  %v1162 = vld [vmem:[%s955 + $0x102] sm:$0xff]
  %v1163 = vld [vmem:[%s955 + $0x112] sm:$0xff]
  %1164 = vst.msk [vmem:[#allocation3 + $0x10] sm:$0xff] %vm403, %v1148
  %1165 = vst.msk [vmem:[#allocation3 + $0x28] sm:$0xff] %vm403, %v1149
  %1166 = vst.msk [vmem:[#allocation3 + $0x40] sm:$0xff] %vm403, %v1150
  %1167 = vst.msk [vmem:[#allocation3 + $0x58] sm:$0xff] %vm403, %v1151
  %1168 = vst.msk [vmem:[#allocation3 + $0x70] sm:$0xff] %vm403, %v1152
  %1169 = vst.msk [vmem:[#allocation3 + $0x88] sm:$0xff] %vm403, %v1153
  %1170 = vst.msk [vmem:[#allocation3 + $0xa0] sm:$0xff] %vm403, %v1154
  %1171 = vst.msk [vmem:[#allocation3 + $0xb8] sm:$0xff] %vm403, %v1155
  %1172 = vst.msk [vmem:[#allocation3 + $0xd0] sm:$0xff] %vm403, %v1156
  %1173 = vst.msk [vmem:[#allocation3 + $0xe8] sm:$0xff] %vm403, %v1157
  %1174 = vst.msk [vmem:[#allocation3 + $0x100] sm:$0xff] %vm403, %v1158
  %1175 = vst.msk [vmem:[#allocation3 + $0x118] sm:$0xff] %vm403, %v1159
  %1176 = vst.msk [vmem:[#allocation3 + $0x130] sm:$0xff] %vm403, %v1160
  %1177 = vst.msk [vmem:[#allocation3 + $0x148] sm:$0xff] %vm403, %v1161
  %1178 = vst.msk [vmem:[#allocation3 + $0x160] sm:$0xff] %vm403, %v1162
  %1179 = vst.msk [vmem:[#allocation3 + $0x178] sm:$0xff] %vm403, %v1163
  %v1180 = vld [vmem:[#allocation3] sm:$0xff]
  %v1181 = vld [vmem:[#allocation3 + $0x8] sm:$0xff]
  %v1182 = vld [vmem:[#allocation3 + $0x10] sm:$0xff]
  %v1183 = vld [vmem:[#allocation3 + $0x18] sm:$0xff]
  %v1184 = vld [vmem:[#allocation3 + $0x20] sm:$0xff]
  %v1185 = vld [vmem:[#allocation3 + $0x28] sm:$0xff]
  %v1186 = vld [vmem:[#allocation3 + $0x30] sm:$0xff]
  %v1187 = vld [vmem:[#allocation3 + $0x38] sm:$0xff]
  %v1188 = vld [vmem:[#allocation3 + $0x40] sm:$0xff]
  %v1189 = vld [vmem:[#allocation3 + $0x48] sm:$0xff]
  %v1190 = vld [vmem:[#allocation3 + $0x50] sm:$0xff]
  %v1191 = vld [vmem:[#allocation3 + $0x58] sm:$0xff]
  %v1192 = vld [vmem:[#allocation3 + $0x60] sm:$0xff]
  %v1193 = vld [vmem:[#allocation3 + $0x68] sm:$0xff]
  %v1194 = vld [vmem:[#allocation3 + $0x70] sm:$0xff]
  %v1195 = vld [vmem:[#allocation3 + $0x78] sm:$0xff]
  %v1196 = vld [vmem:[#allocation3 + $0x80] sm:$0xff]
  %v1197 = vld [vmem:[#allocation3 + $0x88] sm:$0xff]
  %v1198 = vld [vmem:[#allocation3 + $0x90] sm:$0xff]
  %v1199 = vld [vmem:[#allocation3 + $0x98] sm:$0xff]
  %v1200 = vld [vmem:[#allocation3 + $0xa0] sm:$0xff]
  %v1201 = vld [vmem:[#allocation3 + $0xa8] sm:$0xff]
  %v1202 = vld [vmem:[#allocation3 + $0xb0] sm:$0xff]
  %v1203 = vld [vmem:[#allocation3 + $0xb8] sm:$0xff]
  %v1204 = vld [vmem:[#allocation3 + $0xc0] sm:$0xff]
  %v1205 = vld [vmem:[#allocation3 + $0xc8] sm:$0xff]
  %v1206 = vld [vmem:[#allocation3 + $0xd0] sm:$0xff]
  %v1207 = vld [vmem:[#allocation3 + $0xd8] sm:$0xff]
  %v1208 = vld [vmem:[#allocation3 + $0xe0] sm:$0xff]
  %v1209 = vld [vmem:[#allocation3 + $0xe8] sm:$0xff]
  %v1210 = vld [vmem:[#allocation3 + $0xf0] sm:$0xff]
  %v1211 = vld [vmem:[#allocation3 + $0xf8] sm:$0xff]
  %v1212 = vld [vmem:[#allocation3 + $0x100] sm:$0xff]
  %v1213 = vld [vmem:[#allocation3 + $0x108] sm:$0xff]
  %v1214 = vld [vmem:[#allocation3 + $0x110] sm:$0xff]
  %v1215 = vld [vmem:[#allocation3 + $0x118] sm:$0xff]
  %v1216 = vld [vmem:[#allocation3 + $0x120] sm:$0xff]
  %v1217 = vld [vmem:[#allocation3 + $0x128] sm:$0xff]
  %v1218 = vld [vmem:[#allocation3 + $0x130] sm:$0xff]
  %v1219 = vld [vmem:[#allocation3 + $0x138] sm:$0xff]
  %v1220 = vld [vmem:[#allocation3 + $0x140] sm:$0xff]
  %v1221 = vld [vmem:[#allocation3 + $0x148] sm:$0xff]
  %v1222 = vld [vmem:[#allocation3 + $0x150] sm:$0xff]
  %v1223 = vld [vmem:[#allocation3 + $0x158] sm:$0xff]
  %v1224 = vld [vmem:[#allocation3 + $0x160] sm:$0xff]
  %v1225 = vld [vmem:[#allocation3 + $0x168] sm:$0xff]
  %v1226 = vld [vmem:[#allocation3 + $0x170] sm:$0xff]
  %v1227 = vld [vmem:[#allocation3 + $0x178] sm:$0xff]
  %v1228 = vpack.c.bf16 %v1183, %v1180
  %v1229 = vpack.c.bf16 %v1184, %v1181
  %v1230 = vpack.c.bf16 %v1185, %v1182
  %v1231 = vpack.c.bf16 %v1189, %v1186
  %v1232 = vpack.c.bf16 %v1190, %v1187
  %v1233 = vpack.c.bf16 %v1191, %v1188
  %v1234 = vpack.c.bf16 %v1195, %v1192
  %v1235 = vpack.c.bf16 %v1196, %v1193
  %v1236 = vpack.c.bf16 %v1197, %v1194
  %v1237 = vpack.c.bf16 %v1201, %v1198
  %v1238 = vpack.c.bf16 %v1202, %v1199
  %v1239 = vpack.c.bf16 %v1203, %v1200
  %v1240 = vpack.c.bf16 %v1207, %v1204
  %v1241 = vpack.c.bf16 %v1208, %v1205
  %v1242 = vpack.c.bf16 %v1209, %v1206
  %v1243 = vpack.c.bf16 %v1213, %v1210
  %v1244 = vpack.c.bf16 %v1214, %v1211
  %v1245 = vpack.c.bf16 %v1215, %v1212
  %v1246 = vpack.c.bf16 %v1219, %v1216
  %v1247 = vpack.c.bf16 %v1220, %v1217
  %v1248 = vpack.c.bf16 %v1221, %v1218
  %v1249 = vpack.c.bf16 %v1225, %v1222
  %v1250 = vpack.c.bf16 %v1226, %v1223
  %v1251 = vpack.c.bf16 %v1227, %v1224
  %v1252 = vld [vmem:[%s2] sm:$0xf]
  %v1253 = vld [vmem:[%s2 + $0x4] sm:$0xf]
  %v1254 = vld [vmem:[%s2 + $0x8] sm:$0xf]
  %v1255 = vld [vmem:[%s2 + $0xc] sm:$0xf]
  %v1256 = vld [vmem:[%s2 + $0x10] sm:$0xf]
  %v1257 = vld [vmem:[%s2 + $0x14] sm:$0xf]
  %v1258 = vld [vmem:[%s2 + $0x18] sm:$0xf]
  %v1259 = vld [vmem:[%s2 + $0x1c] sm:$0xf]
  %v1260 = vld [vmem:[%s2 + $0x20] sm:$0xf]
  %v1261 = vld [vmem:[%s2 + $0x24] sm:$0xf]
  %v1262 = vld [vmem:[%s2 + $0x28] sm:$0xf]
  %v1263 = vld [vmem:[%s2 + $0x2c] sm:$0xf]
  %v1264 = vld [vmem:[%s2 + $0x30] sm:$0xf]
  %v1265 = vld [vmem:[%s2 + $0x34] sm:$0xf]
  %v1266 = vld [vmem:[%s2 + $0x38] sm:$0xf]
  %v1267 = vld [vmem:[%s2 + $0x3c] sm:$0xf]
  %v1268 = vld [vmem:[%s2 + $0x40] sm:$0xf]
  %v1269 = vld [vmem:[%s2 + $0x44] sm:$0xf]
  %v1270 = vld [vmem:[%s2 + $0x48] sm:$0xf]
  %v1271 = vld [vmem:[%s2 + $0x4c] sm:$0xf]
  %v1272 = vld [vmem:[%s2 + $0x50] sm:$0xf]
  %v1273 = vld [vmem:[%s2 + $0x54] sm:$0xf]
  %v1274 = vld [vmem:[%s2 + $0x58] sm:$0xf]
  %v1275 = vld [vmem:[%s2 + $0x5c] sm:$0xf]
  %v1276 = vld [vmem:[%s2 + $0x60] sm:$0xf]
  %v1277 = vld [vmem:[%s2 + $0x64] sm:$0xf]
  %v1278 = vld [vmem:[%s2 + $0x68] sm:$0xf]
  %v1279 = vld [vmem:[%s2 + $0x6c] sm:$0xf]
  %v1280 = vld [vmem:[%s2 + $0x70] sm:$0xf]
  %v1281 = vld [vmem:[%s2 + $0x74] sm:$0xf]
  %v1282 = vld [vmem:[%s2 + $0x78] sm:$0xf]
  %v1283 = vld [vmem:[%s2 + $0x7c] sm:$0xf]
  %v1284 = vld [vmem:[%s2 + $0x80] sm:$0xf]
  %v1285 = vld [vmem:[%s2 + $0x84] sm:$0xf]
  %v1286 = vld [vmem:[%s2 + $0x88] sm:$0xf]
  %v1287 = vld [vmem:[%s2 + $0x8c] sm:$0xf]
  %v1288 = vld [vmem:[%s3] sm:$0x1]
  %v1290 = vlaneseq
  %v1291 = vshrl.u32 %v1290, 7
  %v1292 = vsub.s32 0, %v1291
  %v1293 = vrot.slane %v1288, %v1292
  %v1331 = vunpack.c.l.b16 %v1252
  %v1332 = vunpack.c.l.b16 %v1253
  %v1333 = vunpack.c.l.b16 %v1254
  %v1334 = vunpack.c.l.b16 %v1255
  %v1335 = vunpack.c.l.b16 %v1256
  %v1336 = vunpack.c.l.b16 %v1257
  %v1337 = vunpack.c.l.b16 %v1258
  %v1338 = vunpack.c.l.b16 %v1259
  %v1339 = vunpack.c.l.b16 %v1260
  %v1340 = vunpack.c.l.b16 %v1261
  %v1341 = vunpack.c.l.b16 %v1262
  %v1342 = vunpack.c.l.b16 %v1263
  %v1343 = vunpack.c.l.b16 %v1264
  %v1344 = vunpack.c.l.b16 %v1265
  %v1345 = vunpack.c.l.b16 %v1266
  %v1346 = vunpack.c.l.b16 %v1267
  %v1347 = vunpack.c.l.b16 %v1268
  %v1348 = vunpack.c.l.b16 %v1269
  %v1349 = vunpack.c.l.b16 %v1270
  %v1350 = vunpack.c.l.b16 %v1271
  %v1351 = vunpack.c.l.b16 %v1272
  %v1352 = vunpack.c.l.b16 %v1273
  %v1353 = vunpack.c.l.b16 %v1274
  %v1354 = vunpack.c.l.b16 %v1275
  %v1355 = vunpack.c.l.b16 %v1276
  %v1356 = vunpack.c.l.b16 %v1277
  %v1357 = vunpack.c.l.b16 %v1278
  %v1358 = vunpack.c.l.b16 %v1279
  %v1359 = vunpack.c.l.b16 %v1280
  %v1360 = vunpack.c.l.b16 %v1281
  %v1361 = vunpack.c.l.b16 %v1282
  %v1362 = vunpack.c.l.b16 %v1283
  %v1363 = vunpack.c.l.b16 %v1284
  %v1364 = vunpack.c.l.b16 %v1285
  %v1365 = vunpack.c.l.b16 %v1286
  %v1366 = vunpack.c.l.b16 %v1287
  %v1367 = vpack.c.b16 %v1332, %v1331
  %v1368 = vpack.c.b16 %v1334, %v1333
  %v1369 = vpack.c.b16 %v1336, %v1335
  %v1370 = vpack.c.b16 %v1338, %v1337
  %v1371 = vpack.c.b16 %v1340, %v1339
  %v1372 = vpack.c.b16 %v1342, %v1341
  %v1373 = vpack.c.b16 %v1344, %v1343
  %v1374 = vpack.c.b16 %v1346, %v1345
  %v1375 = vpack.c.b16 %v1348, %v1347
  %v1376 = vpack.c.b16 %v1350, %v1349
  %v1377 = vpack.c.b16 %v1352, %v1351
  %v1378 = vpack.c.b16 %v1354, %v1353
  %v1379 = vpack.c.b16 %v1356, %v1355
  %v1380 = vpack.c.b16 %v1358, %v1357
  %v1381 = vpack.c.b16 %v1360, %v1359
  %v1382 = vpack.c.b16 %v1362, %v1361
  %v1383 = vpack.c.b16 %v1364, %v1363
  %v1384 = vpack.c.b16 %v1366, %v1365
  %v1404 = vsel %vm403, %v1230, 0
  %v1407 = vsel %vm403, %v1233, 0
  %v1410 = vsel %vm403, %v1236, 0
  %v1413 = vsel %vm403, %v1239, 0
  %v1416 = vsel %vm403, %v1242, 0
  %v1419 = vsel %vm403, %v1245, 0
  %v1422 = vsel %vm403, %v1248, 0
  %v1425 = vsel %vm403, %v1251, 0
  %1427 = vmatprep.subr.bf16.mxu0 0
  %1428 = vmatpush1.bf16.msra.mxu0 %v1367
  %1429 = vmatprep.subr.bf16.mxu0 0
  %1430 = vmatpush1.bf16.msra.mxu0 %v1368
  %1431 = vmatprep.subr.bf16.mxu0 0
  %1432 = vmatpush1.bf16.msra.mxu0 %v1369
  %1433 = vmatprep.subr.bf16.mxu0 0
  %1434 = vmatpush1.bf16.msra.mxu0 %v1370
  %1435 = vmatprep.subr.bf16.mxu0 0
  %1436 = vmatpush1.bf16.msra.mxu0 %v1371
  %1437 = vmatprep.subr.bf16.mxu0 0
  %1438 = vmatpush1.bf16.msra.mxu0 %v1372
  %1439 = vmatprep.subr.bf16.mxu0 0
  %1440 = vmatpush1.bf16.msra.mxu0 %v1373
  %1441 = vmatprep.subr.bf16.mxu0 0
  %1442 = vmatpush1.bf16.msra.mxu0 %v1374
  %1443 = vmatprep.subr.bf16.mxu0 0
  %1444 = vmatpush1.bf16.msra.mxu0 %v1375
  %1445 = vmatprep.subr.bf16.mxu0 0
  %1446 = vmatpush1.bf16.msra.mxu0 %v1376
  %1447 = vmatprep.subr.bf16.mxu0 0
  %1448 = vmatpush1.bf16.msra.mxu0 %v1377
  %1449 = vmatprep.subr.bf16.mxu0 0
  %1450 = vmatpush1.bf16.msra.mxu0 %v1378
  %1451 = vmatprep.subr.bf16.mxu0 0
  %1452 = vmatpush1.bf16.msra.mxu0 %v1379
  %1453 = vmatprep.subr.bf16.mxu0 0
  %1454 = vmatpush1.bf16.msra.mxu0 %v1380
  %1455 = vmatprep.subr.bf16.mxu0 0
  %1456 = vmatpush1.bf16.msra.mxu0 %v1381
  %1457 = vmatprep.subr.bf16.mxu0 0
  %1458 = vmatpush1.bf16.msra.mxu0 %v1382
  %1459 = vmatprep.mubr.bf16.mxu0 %v1229
  %1460 = vmatmul.mubr.bf16.gmra.mrb[0].mxu0 %v1228
  %v1461 = vpop.f32.mrb[0].mxu0
  %v1462 = vadd.f32 %v1293, %v1461
  %v1463 = vpop.f32.mrb[0].mxu0
  %v1464 = vpop.f32.mrb[0].mxu0
  %v1465 = vadd.f32 %v1293, %v1464
  %v1466 = vpop.f32.mrb[0].mxu0
  %1467 = vmatprep.mubr.bf16.mxu0 %v1232
  %1468 = vmatmul.mubr.bf16.gmra.mrb[0].mxu0 %v1231
  %v1469 = vpop.f32.mrb[0].mxu0
  %v1470 = vadd.f32 %v1293, %v1469
  %v1471 = vpop.f32.mrb[0].mxu0
  %v1472 = vpop.f32.mrb[0].mxu0
  %v1473 = vadd.f32 %v1293, %v1472
  %v1474 = vpop.f32.mrb[0].mxu0
  %1475 = vmatprep.mubr.bf16.mxu0 %v1235
  %1476 = vmatmul.mubr.bf16.gmra.mrb[0].mxu0 %v1234
  %v1477 = vpop.f32.mrb[0].mxu0
  %v1478 = vadd.f32 %v1293, %v1477
  %v1479 = vpop.f32.mrb[0].mxu0
  %v1480 = vpop.f32.mrb[0].mxu0
  %v1481 = vadd.f32 %v1293, %v1480
  %v1482 = vpop.f32.mrb[0].mxu0
  %1483 = vmatprep.mubr.bf16.mxu0 %v1238
  %1484 = vmatmul.mubr.bf16.gmra.mrb[0].mxu0 %v1237
  %v1485 = vpop.f32.mrb[0].mxu0
  %v1486 = vadd.f32 %v1293, %v1485
  %v1487 = vpop.f32.mrb[0].mxu0
  %v1488 = vpop.f32.mrb[0].mxu0
  %v1489 = vadd.f32 %v1293, %v1488
  %v1490 = vpop.f32.mrb[0].mxu0
  %1491 = vmatprep.mubr.bf16.mxu0 %v1241
  %1492 = vmatmul.mubr.bf16.gmra.mrb[0].mxu0 %v1240
  %v1493 = vpop.f32.mrb[0].mxu0
  %v1494 = vadd.f32 %v1293, %v1493
  %v1495 = vpop.f32.mrb[0].mxu0
  %v1496 = vpop.f32.mrb[0].mxu0
  %v1497 = vadd.f32 %v1293, %v1496
  %v1498 = vpop.f32.mrb[0].mxu0
  %1499 = vmatprep.mubr.bf16.mxu0 %v1244
  %1500 = vmatmul.mubr.bf16.gmra.mrb[0].mxu0 %v1243
  %v1501 = vpop.f32.mrb[0].mxu0
  %v1502 = vadd.f32 %v1293, %v1501
  %v1503 = vpop.f32.mrb[0].mxu0
  %v1504 = vpop.f32.mrb[0].mxu0
  %v1505 = vadd.f32 %v1293, %v1504
  %v1506 = vpop.f32.mrb[0].mxu0
  %1507 = vmatprep.mubr.bf16.mxu0 %v1247
  %1508 = vmatmul.mubr.bf16.gmra.mrb[0].mxu0 %v1246
  %v1509 = vpop.f32.mrb[0].mxu0
  %v1510 = vadd.f32 %v1293, %v1509
  %v1511 = vpop.f32.mrb[0].mxu0
  %v1512 = vpop.f32.mrb[0].mxu0
  %v1513 = vadd.f32 %v1293, %v1512
  %v1514 = vpop.f32.mrb[0].mxu0
  %1515 = vmatprep.mubr.bf16.mxu0 %v1250
  %1516 = vmatmul.mubr.bf16.gmra.mrb[0].mxu0 %v1249
  %v1517 = vpop.f32.mrb[0].mxu0
  %v1518 = vadd.f32 %v1293, %v1517
  %v1519 = vpop.f32.mrb[0].mxu0
  %v1520 = vpop.f32.mrb[0].mxu0
  %v1521 = vadd.f32 %v1293, %v1520
  %v1522 = vpop.f32.mrb[0].mxu0
  %1523 = vdwg.mxu0
  %1524 = vmatprep.subr.bf16.mxu0 0
  %1525 = vmatpush1.bf16.msra.mxu0 %v1383
  %1526 = vmatprep.subr.bf16.mxu0 0
  %1527 = vmatpush1.bf16.msra.mxu0 %v1384
  %1528 = vmatprep.subr.bf16.mxu0 0
  %1529 = vmatpush1.bf16.msra.mxu0 0
  %1530 = vmatprep.subr.bf16.mxu0 0
  %1531 = vmatpush1.bf16.msra.mxu0 0
  %1532 = vmatprep.subr.bf16.mxu0 0
  %1533 = vmatpush1.bf16.msra.mxu0 0
  %1534 = vmatprep.subr.bf16.mxu0 0
  %1535 = vmatpush1.bf16.msra.mxu0 0
  %1536 = vmatprep.subr.bf16.mxu0 0
  %1537 = vmatpush1.bf16.msra.mxu0 0
  %1538 = vmatprep.subr.bf16.mxu0 0
  %1539 = vmatpush1.bf16.msra.mxu0 0
  %1540 = vmatprep.subr.bf16.mxu0 0
  %1541 = vmatpush1.bf16.msra.mxu0 0
  %1542 = vmatprep.subr.bf16.mxu0 0
  %1543 = vmatpush1.bf16.msra.mxu0 0
  %1544 = vmatprep.subr.bf16.mxu0 0
  %1545 = vmatpush1.bf16.msra.mxu0 0
  %1546 = vmatprep.subr.bf16.mxu0 0
  %1547 = vmatpush1.bf16.msra.mxu0 0
  %1548 = vmatprep.subr.bf16.mxu0 0
  %1549 = vmatpush1.bf16.msra.mxu0 0
  %1550 = vmatprep.subr.bf16.mxu0 0
  %1551 = vmatpush1.bf16.msra.mxu0 0
  %1552 = vmatprep.subr.bf16.mxu0 0
  %1553 = vmatpush1.bf16.msra.mxu0 0
  %1554 = vmatprep.subr.bf16.mxu0 0
  %1555 = vmatpush1.bf16.msra.mxu0 0
  %1556 = vmatprep.mubr.bf16.mxu0 0
  %1557 = vmatmul.mubr.bf16.gmra.mrb[0].mxu0 %v1404
  %v1558 = vpop.f32.mrb[0].mxu0
  %v1559 = vadd.f32 %v1462, %v1558
  %v1560 = vpop.f32.mrb[0].mxu0
  %v1561 = vpop.f32.mrb[0].mxu0
  %v1562 = vadd.f32 %v1465, %v1561
  %v1563 = vpop.f32.mrb[0].mxu0
  %1564 = vmatprep.mubr.bf16.mxu0 0
  %1565 = vmatmul.mubr.bf16.gmra.mrb[0].mxu0 %v1407
  %v1566 = vpop.f32.mrb[0].mxu0
  %v1567 = vadd.f32 %v1470, %v1566
  %v1568 = vpop.f32.mrb[0].mxu0
  %v1569 = vpop.f32.mrb[0].mxu0
  %v1570 = vadd.f32 %v1473, %v1569
  %v1571 = vpop.f32.mrb[0].mxu0
  %1572 = vmatprep.mubr.bf16.mxu0 0
  %1573 = vmatmul.mubr.bf16.gmra.mrb[0].mxu0 %v1410
  %v1574 = vpop.f32.mrb[0].mxu0
  %v1575 = vadd.f32 %v1478, %v1574
  %v1576 = vpop.f32.mrb[0].mxu0
  %v1577 = vpop.f32.mrb[0].mxu0
  %v1578 = vadd.f32 %v1481, %v1577
  %v1579 = vpop.f32.mrb[0].mxu0
  %1580 = vmatprep.mubr.bf16.mxu0 0
  %1581 = vmatmul.mubr.bf16.gmra.mrb[0].mxu0 %v1413
  %v1582 = vpop.f32.mrb[0].mxu0
  %v1583 = vadd.f32 %v1486, %v1582
  %v1584 = vpop.f32.mrb[0].mxu0
  %v1585 = vpop.f32.mrb[0].mxu0
  %v1586 = vadd.f32 %v1489, %v1585
  %v1587 = vpop.f32.mrb[0].mxu0
  %1588 = vmatprep.mubr.bf16.mxu0 0
  %1589 = vmatmul.mubr.bf16.gmra.mrb[0].mxu0 %v1416
  %v1590 = vpop.f32.mrb[0].mxu0
  %v1591 = vadd.f32 %v1494, %v1590
  %v1592 = vpop.f32.mrb[0].mxu0
  %v1593 = vpop.f32.mrb[0].mxu0
  %v1594 = vadd.f32 %v1497, %v1593
  %v1595 = vpop.f32.mrb[0].mxu0
  %1596 = vmatprep.mubr.bf16.mxu0 0
  %1597 = vmatmul.mubr.bf16.gmra.mrb[0].mxu0 %v1419
  %v1598 = vpop.f32.mrb[0].mxu0
  %v1599 = vadd.f32 %v1502, %v1598
  %v1600 = vpop.f32.mrb[0].mxu0
  %v1601 = vpop.f32.mrb[0].mxu0
  %v1602 = vadd.f32 %v1505, %v1601
  %v1603 = vpop.f32.mrb[0].mxu0
  %1604 = vmatprep.mubr.bf16.mxu0 0
  %1605 = vmatmul.mubr.bf16.gmra.mrb[0].mxu0 %v1422
  %v1606 = vpop.f32.mrb[0].mxu0
  %v1607 = vadd.f32 %v1510, %v1606
  %v1608 = vpop.f32.mrb[0].mxu0
  %v1609 = vpop.f32.mrb[0].mxu0
  %v1610 = vadd.f32 %v1513, %v1609
  %v1611 = vpop.f32.mrb[0].mxu0
  %1612 = vmatprep.mubr.bf16.mxu0 0
  %1613 = vmatmul.mubr.bf16.gmra.mrb[0].mxu0 %v1425
  %v1614 = vpop.f32.mrb[0].mxu0
  %v1615 = vadd.f32 %v1518, %v1614
  %v1616 = vpop.f32.mrb[0].mxu0
  %v1617 = vpop.f32.mrb[0].mxu0
  %v1618 = vadd.f32 %v1521, %v1617
  %v1619 = vpop.f32.mrb[0].mxu0
  %1620 = vdwg.mxu0
  %1621 = vst.msk [vmem:[%s4] sm:$0xff] %vm403, %v1559
  %1622 = vst.msk [vmem:[%s4 + $0x8] sm:$0xff] %vm403, %v1562
  %1623 = vst.msk [vmem:[%s4 + $0x10] sm:$0xff] %vm403, %v1567
  %1624 = vst.msk [vmem:[%s4 + $0x18] sm:$0xff] %vm403, %v1570
  %1625 = vst.msk [vmem:[%s4 + $0x20] sm:$0xff] %vm403, %v1575
  %1626 = vst.msk [vmem:[%s4 + $0x28] sm:$0xff] %vm403, %v1578
  %1627 = vst.msk [vmem:[%s4 + $0x30] sm:$0xff] %vm403, %v1583
  %1628 = vst.msk [vmem:[%s4 + $0x38] sm:$0xff] %vm403, %v1586
  %1637 = vrot.lane.b32.xlu0 %v1559, 96
  %v1638 = vpop.permute.xlu0 %1637
  %1639 = vrot.lane.b32.xlu0 %v1562, 96
  %v1640 = vpop.permute.xlu0 %1639
  %1641 = vrot.lane.b32.xlu0 %v1567, 96
  %v1642 = vpop.permute.xlu0 %1641
  %1643 = vrot.lane.b32.xlu0 %v1570, 96
  %v1644 = vpop.permute.xlu0 %1643
  %1645 = vrot.lane.b32.xlu0 %v1575, 96
  %v1646 = vpop.permute.xlu0 %1645
  %1647 = vrot.lane.b32.xlu0 %v1578, 96
  %v1648 = vpop.permute.xlu0 %1647
  %1649 = vrot.lane.b32.xlu0 %v1583, 96
  %v1650 = vpop.permute.xlu0 %1649
  %1651 = vrot.lane.b32.xlu0 %v1586, 96
  %v1652 = vpop.permute.xlu0 %1651
  %s1661 = scalar_lea.vmem %s4, 64
  %1662 = vst.msk [vmem:[%s1661] sm:$0xff] %vm403, %v1638
  %1663 = vst.msk [vmem:[%s1661 + $0x8] sm:$0xff] %vm403, %v1640
  %1664 = vst.msk [vmem:[%s1661 + $0x10] sm:$0xff] %vm403, %v1642
  %1665 = vst.msk [vmem:[%s1661 + $0x18] sm:$0xff] %vm403, %v1644
  %1666 = vst.msk [vmem:[%s1661 + $0x20] sm:$0xff] %vm403, %v1646
  %1667 = vst.msk [vmem:[%s1661 + $0x28] sm:$0xff] %vm403, %v1648
  %1668 = vst.msk [vmem:[%s1661 + $0x30] sm:$0xff] %vm403, %v1650
  %1669 = vst.msk [vmem:[%s1661 + $0x38] sm:$0xff] %vm403, %v1652
  %1670 = vrot.lane.b32.xlu0 %v1559, 64
  %v1671 = vpop.permute.xlu0 %1670
  %1672 = vrot.lane.b32.xlu0 %v1562, 64
  %v1673 = vpop.permute.xlu0 %1672
  %1674 = vrot.lane.b32.xlu0 %v1567, 64
  %v1675 = vpop.permute.xlu0 %1674
  %1676 = vrot.lane.b32.xlu0 %v1570, 64
  %v1677 = vpop.permute.xlu0 %1676
  %1678 = vrot.lane.b32.xlu0 %v1575, 64
  %v1679 = vpop.permute.xlu0 %1678
  %1680 = vrot.lane.b32.xlu0 %v1578, 64
  %v1681 = vpop.permute.xlu0 %1680
  %1682 = vrot.lane.b32.xlu0 %v1583, 64
  %v1683 = vpop.permute.xlu0 %1682
  %1684 = vrot.lane.b32.xlu0 %v1586, 64
  %v1685 = vpop.permute.xlu0 %1684
  %s1694 = scalar_lea.vmem %s4, 128
  %1695 = vst.msk [vmem:[%s1694] sm:$0xff] %vm403, %v1671
  %1696 = vst.msk [vmem:[%s1694 + $0x8] sm:$0xff] %vm403, %v1673
  %1697 = vst.msk [vmem:[%s1694 + $0x10] sm:$0xff] %vm403, %v1675
  %1698 = vst.msk [vmem:[%s1694 + $0x18] sm:$0xff] %vm403, %v1677
  %1699 = vst.msk [vmem:[%s1694 + $0x20] sm:$0xff] %vm403, %v1679
  %1700 = vst.msk [vmem:[%s1694 + $0x28] sm:$0xff] %vm403, %v1681
  %1701 = vst.msk [vmem:[%s1694 + $0x30] sm:$0xff] %vm403, %v1683
  %1702 = vst.msk [vmem:[%s1694 + $0x38] sm:$0xff] %vm403, %v1685
  %1703 = vrot.lane.b32.xlu0 %v1559, 32
  %v1704 = vpop.permute.xlu0 %1703
  %1705 = vrot.lane.b32.xlu0 %v1562, 32
  %v1706 = vpop.permute.xlu0 %1705
  %1707 = vrot.lane.b32.xlu0 %v1567, 32
  %v1708 = vpop.permute.xlu0 %1707
  %1709 = vrot.lane.b32.xlu0 %v1570, 32
  %v1710 = vpop.permute.xlu0 %1709
  %1711 = vrot.lane.b32.xlu0 %v1575, 32
  %v1712 = vpop.permute.xlu0 %1711
  %1713 = vrot.lane.b32.xlu0 %v1578, 32
  %v1714 = vpop.permute.xlu0 %1713
  %1715 = vrot.lane.b32.xlu0 %v1583, 32
  %v1716 = vpop.permute.xlu0 %1715
  %1717 = vrot.lane.b32.xlu0 %v1586, 32
  %v1718 = vpop.permute.xlu0 %1717
  %s1727 = scalar_lea.vmem %s4, 192
  %1728 = vst.msk [vmem:[%s1727] sm:$0xff] %vm403, %v1704
  %1729 = vst.msk [vmem:[%s1727 + $0x8] sm:$0xff] %vm403, %v1706
  %1730 = vst.msk [vmem:[%s1727 + $0x10] sm:$0xff] %vm403, %v1708
  %1731 = vst.msk [vmem:[%s1727 + $0x18] sm:$0xff] %vm403, %v1710
  %1732 = vst.msk [vmem:[%s1727 + $0x20] sm:$0xff] %vm403, %v1712
  %1733 = vst.msk [vmem:[%s1727 + $0x28] sm:$0xff] %vm403, %v1714
  %1734 = vst.msk [vmem:[%s1727 + $0x30] sm:$0xff] %vm403, %v1716
  %1735 = vst.msk [vmem:[%s1727 + $0x38] sm:$0xff] %vm403, %v1718
  %s1736 = scalar_lea.vmem %s4, 256
  %1737 = vst.msk [vmem:[%s1736] sm:$0xff] %vm403, %v1591
  %1738 = vst.msk [vmem:[%s1736 + $0x8] sm:$0xff] %vm403, %v1594
  %1739 = vst.msk [vmem:[%s1736 + $0x10] sm:$0xff] %vm403, %v1599
  %1740 = vst.msk [vmem:[%s1736 + $0x18] sm:$0xff] %vm403, %v1602
  %1741 = vst.msk [vmem:[%s1736 + $0x20] sm:$0xff] %vm403, %v1607
  %1742 = vst.msk [vmem:[%s1736 + $0x28] sm:$0xff] %vm403, %v1610
  %1743 = vst.msk [vmem:[%s1736 + $0x30] sm:$0xff] %vm403, %v1615
  %1744 = vst.msk [vmem:[%s1736 + $0x38] sm:$0xff] %vm403, %v1618
  %1753 = vrot.lane.b32.xlu0 %v1591, 96
  %v1754 = vpop.permute.xlu0 %1753
  %1755 = vrot.lane.b32.xlu0 %v1594, 96
  %v1756 = vpop.permute.xlu0 %1755
  %1757 = vrot.lane.b32.xlu0 %v1599, 96
  %v1758 = vpop.permute.xlu0 %1757
  %1759 = vrot.lane.b32.xlu0 %v1602, 96
  %v1760 = vpop.permute.xlu0 %1759
  %1761 = vrot.lane.b32.xlu0 %v1607, 96
  %v1762 = vpop.permute.xlu0 %1761
  %1763 = vrot.lane.b32.xlu0 %v1610, 96
  %v1764 = vpop.permute.xlu0 %1763
  %1765 = vrot.lane.b32.xlu0 %v1615, 96
  %v1766 = vpop.permute.xlu0 %1765
  %1767 = vrot.lane.b32.xlu0 %v1618, 96
  %v1768 = vpop.permute.xlu0 %1767
  %s1777 = scalar_lea.vmem %s4, 320
  %1778 = vst.msk [vmem:[%s1777] sm:$0xff] %vm403, %v1754
  %1779 = vst.msk [vmem:[%s1777 + $0x8] sm:$0xff] %vm403, %v1756
  %1780 = vst.msk [vmem:[%s1777 + $0x10] sm:$0xff] %vm403, %v1758
  %1781 = vst.msk [vmem:[%s1777 + $0x18] sm:$0xff] %vm403, %v1760
  %1782 = vst.msk [vmem:[%s1777 + $0x20] sm:$0xff] %vm403, %v1762
  %1783 = vst.msk [vmem:[%s1777 + $0x28] sm:$0xff] %vm403, %v1764
  %1784 = vst.msk [vmem:[%s1777 + $0x30] sm:$0xff] %vm403, %v1766
  %1785 = vst.msk [vmem:[%s1777 + $0x38] sm:$0xff] %vm403, %v1768
  %1786 = vrot.lane.b32.xlu0 %v1591, 64
  %v1787 = vpop.permute.xlu0 %1786
  %1788 = vrot.lane.b32.xlu0 %v1594, 64
  %v1789 = vpop.permute.xlu0 %1788
  %1790 = vrot.lane.b32.xlu0 %v1599, 64
  %v1791 = vpop.permute.xlu0 %1790
  %1792 = vrot.lane.b32.xlu0 %v1602, 64
  %v1793 = vpop.permute.xlu0 %1792
  %1794 = vrot.lane.b32.xlu0 %v1607, 64
  %v1795 = vpop.permute.xlu0 %1794
  %1796 = vrot.lane.b32.xlu0 %v1610, 64
  %v1797 = vpop.permute.xlu0 %1796
  %1798 = vrot.lane.b32.xlu0 %v1615, 64
  %v1799 = vpop.permute.xlu0 %1798
  %1800 = vrot.lane.b32.xlu0 %v1618, 64
  %v1801 = vpop.permute.xlu0 %1800
  %s1810 = scalar_lea.vmem %s4, 384
  %1811 = vst.msk [vmem:[%s1810] sm:$0xff] %vm403, %v1787
  %1812 = vst.msk [vmem:[%s1810 + $0x8] sm:$0xff] %vm403, %v1789
  %1813 = vst.msk [vmem:[%s1810 + $0x10] sm:$0xff] %vm403, %v1791
  %1814 = vst.msk [vmem:[%s1810 + $0x18] sm:$0xff] %vm403, %v1793
  %1815 = vst.msk [vmem:[%s1810 + $0x20] sm:$0xff] %vm403, %v1795
  %1816 = vst.msk [vmem:[%s1810 + $0x28] sm:$0xff] %vm403, %v1797
  %1817 = vst.msk [vmem:[%s1810 + $0x30] sm:$0xff] %vm403, %v1799
  %1818 = vst.msk [vmem:[%s1810 + $0x38] sm:$0xff] %vm403, %v1801
  %1819 = vrot.lane.b32.xlu0 %v1591, 32
  %v1820 = vpop.permute.xlu0 %1819
  %1821 = vrot.lane.b32.xlu0 %v1594, 32
  %v1822 = vpop.permute.xlu0 %1821
  %1823 = vrot.lane.b32.xlu0 %v1599, 32
  %v1824 = vpop.permute.xlu0 %1823
  %1825 = vrot.lane.b32.xlu0 %v1602, 32
  %v1826 = vpop.permute.xlu0 %1825
  %1827 = vrot.lane.b32.xlu0 %v1607, 32
  %v1828 = vpop.permute.xlu0 %1827
  %1829 = vrot.lane.b32.xlu0 %v1610, 32
  %v1830 = vpop.permute.xlu0 %1829
  %1831 = vrot.lane.b32.xlu0 %v1615, 32
  %v1832 = vpop.permute.xlu0 %1831
  %1833 = vrot.lane.b32.xlu0 %v1618, 32
  %v1834 = vpop.permute.xlu0 %1833
  %s1843 = scalar_lea.vmem %s4, 448
  %1844 = vst.msk [vmem:[%s1843] sm:$0xff] %vm403, %v1820
  %1845 = vst.msk [vmem:[%s1843 + $0x8] sm:$0xff] %vm403, %v1822
  %1846 = vst.msk [vmem:[%s1843 + $0x10] sm:$0xff] %vm403, %v1824
  %1847 = vst.msk [vmem:[%s1843 + $0x18] sm:$0xff] %vm403, %v1826
  %1848 = vst.msk [vmem:[%s1843 + $0x20] sm:$0xff] %vm403, %v1828
  %1849 = vst.msk [vmem:[%s1843 + $0x28] sm:$0xff] %vm403, %v1830
  %1850 = vst.msk [vmem:[%s1843 + $0x30] sm:$0xff] %vm403, %v1832
  %1851 = vst.msk [vmem:[%s1843 + $0x38] sm:$0xff] %vm403, %v1834
  // Predicated region
  $region18: #{transition_up.1} parent=0 // pred_check
    _
  $region19: #{transition_up.1} parent=0 // pred_check_branch
    %1853 = sbr.rel (0) target = $region21
  $region20: #{transition_up.1} parent=0 // pred_region
    _
  $region21: #{transition_up.1} parent=0 // pred_fallthru
    _
  // Predicated region
  $region22: #{transition_up.1} parent=0 // pred_check
    _
  $region23: #{transition_up.1} parent=0 // pred_check_branch
    %1855 = sbr.rel (0) target = $region25
  $region24: #{transition_up.1} parent=0 // pred_region
    _
  $region25: #{transition_up.1} parent=0 // pred_fallthru
    _

</llo_original>
